<compile_context>
chip_gen: v6e
topology: v6e:2x2x1
jax: 0.10.0
libtpu: 0.0.40
codegen_flags: <defaults>
</compile_context>

<pallas_src>
import jax
import jax.numpy as jnp
from jax.experimental import pallas as pl
from jax.experimental.pallas import tpu as pltpu

FEA_DIM = 9
INIT_DIM = 32
EPS = 1e-5


def _round_up(x, m):
    return (x + m - 1) // m * m


# ---------------------------------------------------------------------------
# kernels
# ---------------------------------------------------------------------------
def _compute(x_ref, w1_ref, b1_ref, w2_ref, b2_ref, w3_ref, b3_ref, w4_ref, b4_ref):
    x = x_ref[...].astype(jnp.float32)
    # layer1 : Linear (bn1 + BN folded) + ReLU
    h1 = jnp.maximum(
        jnp.dot(x, w1_ref[...], preferred_element_type=jnp.float32) + b1_ref[...], 0.0)
    # layer2 : Linear (BN folded) + ReLU
    h2 = jnp.maximum(
        jnp.dot(h1, w2_ref[...], preferred_element_type=jnp.float32) + b2_ref[...], 0.0)
    # layer3 : Linear (BN folded) + ReLU
    h3 = jnp.maximum(
        jnp.dot(h2, w3_ref[...], preferred_element_type=jnp.float32) + b3_ref[...], 0.0)
    # out : plain Linear
    out = jnp.dot(h3, w4_ref[...], preferred_element_type=jnp.float32) + b4_ref[...]
    return out, h1, h2, h3


def _kernel_full(x_ref, w1_ref, b1_ref, w2_ref, b2_ref, w3_ref, b3_ref,
                 w4_ref, b4_ref, out_ref, h1_ref, h2_ref, h3_ref):
    out, h1, h2, h3 = _compute(x_ref, w1_ref, b1_ref, w2_ref, b2_ref,
                               w3_ref, b3_ref, w4_ref, b4_ref)
    out_ref[...] = out.astype(out_ref.dtype)
    h1_ref[...] = h1.astype(h1_ref.dtype)
    h2_ref[...] = h2.astype(h2_ref.dtype)
    h3_ref[...] = h3.astype(h3_ref.dtype)


def _kernel_out_only(x_ref, w1_ref, b1_ref, w2_ref, b2_ref, w3_ref, b3_ref,
                     w4_ref, b4_ref, out_ref):
    out, _, _, _ = _compute(x_ref, w1_ref, b1_ref, w2_ref, b2_ref,
                            w3_ref, b3_ref, w4_ref, b4_ref)
    out_ref[...] = out.astype(out_ref.dtype)


# ---------------------------------------------------------------------------
# wrapper
# ---------------------------------------------------------------------------
def ppmodel_in_forward(pt_fea, params, *, tile_n=2048, return_intermediates=True,
                       out_dtype=jnp.float32):
    """pt_fea: (N, FEA_DIM) float32.

    Returns (out, h1, h2, h3) when return_intermediates (module semantics),
    otherwise just `out`.  Use out_dtype=jnp.bfloat16 on v6e/v7x to halve
    HBM write bytes (MXU accumulation remains f32).
    """
    N, F = pt_fea.shape
    assert F == FEA_DIM
    w1, b1, w2, b2, w3, b3, w4, b4 = params
    d1, d2, d3, d4 = INIT_DIM, INIT_DIM * 2, INIT_DIM * 4, INIT_DIM * 8

    # Tile rows: keep a multiple of 8 (sublane), shrink for tiny N, and pad N
    # up to a tile multiple so any point count is accepted.
    tile = max(8, min(int(tile_n), _round_up(N, 8)))
    n_pad = _round_up(N, tile)
    x = pt_fea if n_pad == N else jnp.pad(pt_fea, ((0, n_pad - N), (0, 0)))

    grid = (n_pad // tile,)

    def _param_spec(shape):
        # parameter resident in VMEM every grid step (constant index_map -> no re-DMA)
        return pl.BlockSpec(shape, lambda i: (0,) * len(shape))

    in_specs = [
        pl.BlockSpec((tile, F), lambda i: (i, 0)),     # x tile
        _param_spec((F, d1)), _param_spec((1, d1)),    # layer1 (bn1 + BN folded)
        _param_spec((d1, d2)), _param_spec((1, d2)),   # layer2 (BN folded)
        _param_spec((d2, d3)), _param_spec((1, d3)),   # layer3 (BN folded)
        _param_spec((d3, d4)), _param_spec((1, d4)),   # out
    ]

    out_specs = [pl.BlockSpec((tile, d4), lambda i: (i, 0))]
    out_shape = [jax.ShapeDtypeStruct((n_pad, d4), out_dtype)]
    kernel = _kernel_out_only
    if return_intermediates:
        kernel = _kernel_full
        for d in (d1, d2, d3):
            out_specs.append(pl.BlockSpec((tile, d), lambda i: (i, 0)))
            out_shape.append(jax.ShapeDtypeStruct((n_pad, d), out_dtype))

    out_itemsize = jnp.dtype(out_dtype).itemsize
    out_cols = d4 + (d1 + d2 + d3 if return_intermediates else 0)
    param_bytes = 4 * (F * d1 + d1 + d1 * d2 + d2 + d2 * d3 + d3 + d3 * d4 + d4)

    # Advisory cost hint for the XLA scheduler.
    flops = 2 * n_pad * (F * d1 + d1 * d2 + d2 * d3 + d3 * d4)
    bytes_accessed = 4 * n_pad * F + out_itemsize * n_pad * out_cols + param_bytes
    cost = pl.CostEstimate(flops=flops, transcendentals=0,
                           bytes_accessed=bytes_accessed)

    # Scoped-VMEM request sized from the actual footprint (double-buffered x +
    # outputs + resident params), capped below v7x's 64 MiB physical VMEM.
    vmem_need = 2 * tile * (F * 4 + out_cols * out_itemsize) + 2 * param_bytes
    vmem_limit = int(min(48 * 1024 * 1024, max(16 * 1024 * 1024, 2 * vmem_need)))

    outs = pl.pallas_call(
        kernel,
        out_shape=out_shape,
        grid_spec=pltpu.PrefetchScalarGridSpec(
            num_scalar_prefetch=0,
            grid=grid,
            in_specs=in_specs,
            out_specs=out_specs,
        ),
        compiler_params=pltpu.CompilerParams(
            dimension_semantics=("parallel",),      # shards grid steps on v7x 2-TC
            vmem_limit_bytes=vmem_limit,
        ),
        cost_estimate=cost,
    )(x, w1, b1, w2, b2, w3, b3, w4, b4)

    outs = [o[:N] for o in outs] if n_pad != N else list(outs)
    if return_intermediates:
        return tuple(outs)  # (out, h1, h2, h3)
    return outs[0]


# ---------------------------------------------------------------------------
# deterministic synthetic parameter construction + BN folding (plain JAX glue)
# ---------------------------------------------------------------------------
def make_params(key):
    dims = [FEA_DIM, INIT_DIM, INIT_DIM * 2, INIT_DIM * 4, INIT_DIM * 8]
    keys = jax.random.split(key, 32)
    ki = iter(range(32))

    def bn_params(c):
        gamma = 1.0 + 0.1 * jax.random.normal(keys[next(ki)], (c,), jnp.float32)
        beta = 0.1 * jax.random.normal(keys[next(ki)], (c,), jnp.float32)
        mean = 0.1 * jax.random.normal(keys[next(ki)], (c,), jnp.float32)
        var = 1.0 + 0.1 * jax.random.uniform(keys[next(ki)], (c,), jnp.float32)
        return gamma, beta, mean, var

    def linear_params(cin, cout):
        bound = 1.0 / jnp.sqrt(cin)
        w = jax.random.uniform(keys[next(ki)], (cin, cout), jnp.float32, -bound, bound)
        b = jax.random.uniform(keys[next(ki)], (cout,), jnp.float32, -bound, bound)
        return w, b

    # bn1 on the raw input: x_hat = x * s0 + t0
    g0, be0, m0, v0 = bn_params(dims[0])
    s0 = g0 / jnp.sqrt(v0 + EPS)
    t0 = be0 - m0 * s0

    eff, raw = [], []
    for li in range(3):
        w, b = linear_params(dims[li], dims[li + 1])
        g, be, m, v = bn_params(dims[li + 1])
        s = g / jnp.sqrt(v + EPS)
        w_eff = w * s[None, :]
        b_eff = (b - m) * s + be
        eff.append((w_eff, b_eff))
        raw.append((w, b, g, be, m, v))

    w4, b4 = linear_params(dims[3], dims[4])

    # fold bn1 into layer1: (x*s0 + t0) @ W + B == x @ (s0[:,None]*W) + (t0@W + B)
    w1_full = s0[:, None] * eff[0][0]
    b1_full = t0 @ eff[0][0] + eff[0][1]

    params = (w1_full, b1_full.reshape(1, -1),
              eff[1][0], eff[1][1].reshape(1, -1),
              eff[2][0], eff[2][1].reshape(1, -1),
              w4, b4.reshape(1, -1))
    ref_params = ((g0, be0, m0, v0), raw, (w4, b4))
    return params, ref_params


def reference_forward(x, ref_params):
    (g0, be0, m0, v0), raw, (w4, b4) = ref_params

    def bn(x, g, be, m, v):
        return (x - m) / jnp.sqrt(v + EPS) * g + be

    x = bn(x, g0, be0, m0, v0)
    hs = []
    h = x
    for (w, b, g, be, m, v) in raw:
        h = jnp.maximum(bn(h @ w + b, g, be, m, v), 0.0)
        hs.append(h)
    out = hs[-1] @ w4 + b4
    return out, hs[0], hs[1], hs[2]


if __name__ == "__main__":
    key = jax.random.PRNGKey(0)
    k_param, k_x = jax.random.split(key)

    N = 300  # deliberately NOT tile-aligned: exercises the padding path
    pt_fea = jax.random.normal(k_x, (N, FEA_DIM), jnp.float32)

    params, ref_params = make_params(k_param)

    out, h1, h2, h3 = ppmodel_in_forward(pt_fea, params)
    jax.block_until_ready(out)

    r_out, r_h1, r_h2, r_h3 = reference_forward(pt_fea, ref_params)
    for a, b in ((out, r_out), (h1, r_h1), (h2, r_h2), (h3, r_h3)):
        assert a.shape == b.shape, (a.shape, b.shape)
        assert jnp.max(jnp.abs(a - b)) < 1e-4, "mismatch vs reference"

    # out-only fast path (drops ~47% of HBM write traffic)
    out_only = ppmodel_in_forward(pt_fea, params, return_intermediates=False)
    jax.block_until_ready(out_only)
    assert jnp.max(jnp.abs(out_only - r_out)) < 1e-4, "out-only mismatch"

    # multi-tile path (grid > 1) with a small tile to exercise pipelining
    out_mt, h1_mt, h2_mt, h3_mt = ppmodel_in_forward(pt_fea, params, tile_n=128)
    jax.block_until_ready(out_mt)
    assert jnp.max(jnp.abs(out_mt - r_out)) < 1e-4, "multi-tile mismatch"

    print("KERNEL_OK")
</pallas_src>

<mosaic_0001>
module attributes {stable_mosaic.version = 11 : i64} {
  func.func @_kernel_full(%arg0: i32, %arg1: memref<304x9xf32, #tpu.memory_space<vmem>>, %arg2: memref<9x32xf32, #tpu.memory_space<vmem>>, %arg3: memref<1x32xf32, #tpu.memory_space<vmem>>, %arg4: memref<32x64xf32, #tpu.memory_space<vmem>>, %arg5: memref<1x64xf32, #tpu.memory_space<vmem>>, %arg6: memref<64x128xf32, #tpu.memory_space<vmem>>, %arg7: memref<1x128xf32, #tpu.memory_space<vmem>>, %arg8: memref<128x256xf32, #tpu.memory_space<vmem>>, %arg9: memref<1x256xf32, #tpu.memory_space<vmem>>, %arg10: memref<304x256xf32, #tpu.memory_space<vmem>>, %arg11: memref<304x32xf32, #tpu.memory_space<vmem>>, %arg12: memref<304x64xf32, #tpu.memory_space<vmem>>, %arg13: memref<304x128xf32, #tpu.memory_space<vmem>>) attributes {dimension_semantics = [#tpu.dimension_semantics<parallel>], iteration_bounds = array<i64: 1>, scalar_prefetch = 0 : i64, scratch_operands = 0 : i64, tpu.core_type = #tpu.core_type<tc>, window_params = [{transform_indices = @transform_0, window_bounds = array<i64: 304, 9>}, {pipeline_mode = #tpu.pipeline_mode<synchronous>, transform_indices = @transform_1, window_bounds = array<i64: 9, 32>}, {pipeline_mode = #tpu.pipeline_mode<synchronous>, transform_indices = @transform_2, window_bounds = array<i64: 1, 32>}, {pipeline_mode = #tpu.pipeline_mode<synchronous>, transform_indices = @transform_3, window_bounds = array<i64: 32, 64>}, {pipeline_mode = #tpu.pipeline_mode<synchronous>, transform_indices = @transform_4, window_bounds = array<i64: 1, 64>}, {pipeline_mode = #tpu.pipeline_mode<synchronous>, transform_indices = @transform_5, window_bounds = array<i64: 64, 128>}, {pipeline_mode = #tpu.pipeline_mode<synchronous>, transform_indices = @transform_6, window_bounds = array<i64: 1, 128>}, {pipeline_mode = #tpu.pipeline_mode<synchronous>, transform_indices = @transform_7, window_bounds = array<i64: 128, 256>}, {pipeline_mode = #tpu.pipeline_mode<synchronous>, transform_indices = @transform_8, window_bounds = array<i64: 1, 256>}, {transform_indices = @transform_9, window_bounds = array<i64: 304, 256>}, {transform_indices = @transform_10, window_bounds = array<i64: 304, 32>}, {transform_indices = @transform_11, window_bounds = array<i64: 304, 64>}, {transform_indices = @transform_12, window_bounds = array<i64: 304, 128>}]} {
    %c0 = arith.constant 0 : index
    %c0_0 = arith.constant 0 : index
    %0 = vector.load %arg1[%c0, %c0_0] : memref<304x9xf32, #tpu.memory_space<vmem>>, vector<304x9xf32>
    %c0_1 = arith.constant 0 : index
    %c0_2 = arith.constant 0 : index
    %1 = vector.load %arg2[%c0_1, %c0_2] : memref<9x32xf32, #tpu.memory_space<vmem>>, vector<9x32xf32>
    %cst = arith.constant dense<0.000000e+00> : vector<304x32xf32>
    %2 = tpu.matmul %0, %1, %cst {dimension_numbers = #tpu.dot_dimension_numbers<[1], [0], [0], [1], [0, 0, 1, 1], [], []>} : vector<304x9xf32>, vector<9x32xf32>, vector<304x32xf32> -> vector<304x32xf32>
    %c0_3 = arith.constant 0 : index
    %c0_4 = arith.constant 0 : index
    %3 = vector.load %arg3[%c0_3, %c0_4] : memref<1x32xf32, #tpu.memory_space<vmem>>, vector<1x32xf32>
    %4 = vector.broadcast %3 : vector<1x32xf32> to vector<304x32xf32>
    %5 = arith.addf %2, %4 : vector<304x32xf32>
    %cst_5 = arith.constant 0.000000e+00 : f32
    %6 = vector.broadcast %cst_5 : f32 to vector<304x32xf32>
    %7 = arith.maximumf %5, %6 : vector<304x32xf32>
    %c0_6 = arith.constant 0 : index
    %c0_7 = arith.constant 0 : index
    %8 = vector.load %arg4[%c0_6, %c0_7] : memref<32x64xf32, #tpu.memory_space<vmem>>, vector<32x64xf32>
    %cst_8 = arith.constant dense<0.000000e+00> : vector<304x64xf32>
    %9 = tpu.matmul %7, %8, %cst_8 {dimension_numbers = #tpu.dot_dimension_numbers<[1], [0], [0], [1], [0, 0, 1, 1], [], []>} : vector<304x32xf32>, vector<32x64xf32>, vector<304x64xf32> -> vector<304x64xf32>
    %c0_9 = arith.constant 0 : index
    %c0_10 = arith.constant 0 : index
    %10 = vector.load %arg5[%c0_9, %c0_10] : memref<1x64xf32, #tpu.memory_space<vmem>>, vector<1x64xf32>
    %11 = vector.broadcast %10 : vector<1x64xf32> to vector<304x64xf32>
    %12 = arith.addf %9, %11 : vector<304x64xf32>
    %cst_11 = arith.constant 0.000000e+00 : f32
    %13 = vector.broadcast %cst_11 : f32 to vector<304x64xf32>
    %14 = arith.maximumf %12, %13 : vector<304x64xf32>
    %c0_12 = arith.constant 0 : index
    %c0_13 = arith.constant 0 : index
    %15 = vector.load %arg6[%c0_12, %c0_13] : memref<64x128xf32, #tpu.memory_space<vmem>>, vector<64x128xf32>
    %cst_14 = arith.constant dense<0.000000e+00> : vector<304x128xf32>
    %16 = tpu.matmul %14, %15, %cst_14 {dimension_numbers = #tpu.dot_dimension_numbers<[1], [0], [0], [1], [0, 0, 1, 1], [], []>} : vector<304x64xf32>, vector<64x128xf32>, vector<304x128xf32> -> vector<304x128xf32>
    %c0_15 = arith.constant 0 : index
    %c0_16 = arith.constant 0 : index
    %17 = vector.load %arg7[%c0_15, %c0_16] : memref<1x128xf32, #tpu.memory_space<vmem>>, vector<1x128xf32>
    %18 = vector.broadcast %17 : vector<1x128xf32> to vector<304x128xf32>
    %19 = arith.addf %16, %18 : vector<304x128xf32>
    %cst_17 = arith.constant 0.000000e+00 : f32
    %20 = vector.broadcast %cst_17 : f32 to vector<304x128xf32>
    %21 = arith.maximumf %19, %20 : vector<304x128xf32>
    %c0_18 = arith.constant 0 : index
    %c0_19 = arith.constant 0 : index
    %22 = vector.load %arg8[%c0_18, %c0_19] : memref<128x256xf32, #tpu.memory_space<vmem>>, vector<128x256xf32>
    %cst_20 = arith.constant dense<0.000000e+00> : vector<304x256xf32>
    %23 = tpu.matmul %21, %22, %cst_20 {dimension_numbers = #tpu.dot_dimension_numbers<[1], [0], [0], [1], [0, 0, 1, 1], [], []>} : vector<304x128xf32>, vector<128x256xf32>, vector<304x256xf32> -> vector<304x256xf32>
    %c0_21 = arith.constant 0 : index
    %c0_22 = arith.constant 0 : index
    %24 = vector.load %arg9[%c0_21, %c0_22] : memref<1x256xf32, #tpu.memory_space<vmem>>, vector<1x256xf32>
    %25 = vector.broadcast %24 : vector<1x256xf32> to vector<304x256xf32>
    %26 = arith.addf %23, %25 : vector<304x256xf32>
    %c0_23 = arith.constant 0 : index
    %c0_24 = arith.constant 0 : index
    %27 = vector.load %arg10[%c0_23, %c0_24] : memref<304x256xf32, #tpu.memory_space<vmem>>, vector<304x256xf32>
    tpu.vector_store %arg10[%c0_23, %c0_24], %26 {strides = array<i32>} : memref<304x256xf32, #tpu.memory_space<vmem>>, vector<304x256xf32>,
    %c0_25 = arith.constant 0 : index
    %c0_26 = arith.constant 0 : index
    %28 = vector.load %arg11[%c0_25, %c0_26] : memref<304x32xf32, #tpu.memory_space<vmem>>, vector<304x32xf32>
    tpu.vector_store %arg11[%c0_25, %c0_26], %7 {strides = array<i32>} : memref<304x32xf32, #tpu.memory_space<vmem>>, vector<304x32xf32>,
    %c0_27 = arith.constant 0 : index
    %c0_28 = arith.constant 0 : index
    %29 = vector.load %arg12[%c0_27, %c0_28] : memref<304x64xf32, #tpu.memory_space<vmem>>, vector<304x64xf32>
    tpu.vector_store %arg12[%c0_27, %c0_28], %14 {strides = array<i32>} : memref<304x64xf32, #tpu.memory_space<vmem>>, vector<304x64xf32>,
    %c0_29 = arith.constant 0 : index
    %c0_30 = arith.constant 0 : index
    %30 = vector.load %arg13[%c0_29, %c0_30] : memref<304x128xf32, #tpu.memory_space<vmem>>, vector<304x128xf32>
    tpu.vector_store %arg13[%c0_29, %c0_30], %21 {strides = array<i32>} : memref<304x128xf32, #tpu.memory_space<vmem>>, vector<304x128xf32>,
    return
  }
  func.func @transform_0(%arg0: i32) -> (i32, i32) {
    %c0_i32 = arith.constant 0 : i32
    %c0_i32_0 = arith.constant 0 : i32
    return %arg0, %c0_i32 : i32, i32
  }
  func.func @transform_1(%arg0: i32) -> (i32, i32) {
    %c0_i32 = arith.constant 0 : i32
    %c0_i32_0 = arith.constant 0 : i32
    %c0_i32_1 = arith.constant 0 : i32
    return %c0_i32, %c0_i32_0 : i32, i32
  }
  func.func @transform_2(%arg0: i32) -> (i32, i32) {
    %c0_i32 = arith.constant 0 : i32
    %c0_i32_0 = arith.constant 0 : i32
    %c0_i32_1 = arith.constant 0 : i32
    return %c0_i32, %c0_i32_0 : i32, i32
  }
  func.func @transform_3(%arg0: i32) -> (i32, i32) {
    %c0_i32 = arith.constant 0 : i32
    %c0_i32_0 = arith.constant 0 : i32
    %c0_i32_1 = arith.constant 0 : i32
    return %c0_i32, %c0_i32_0 : i32, i32
  }
  func.func @transform_4(%arg0: i32) -> (i32, i32) {
    %c0_i32 = arith.constant 0 : i32
    %c0_i32_0 = arith.constant 0 : i32
    %c0_i32_1 = arith.constant 0 : i32
    return %c0_i32, %c0_i32_0 : i32, i32
  }
  func.func @transform_5(%arg0: i32) -> (i32, i32) {
    %c0_i32 = arith.constant 0 : i32
    %c0_i32_0 = arith.constant 0 : i32
    %c0_i32_1 = arith.constant 0 : i32
    return %c0_i32, %c0_i32_0 : i32, i32
  }
  func.func @transform_6(%arg0: i32) -> (i32, i32) {
    %c0_i32 = arith.constant 0 : i32
    %c0_i32_0 = arith.constant 0 : i32
    %c0_i32_1 = arith.constant 0 : i32
    return %c0_i32, %c0_i32_0 : i32, i32
  }
  func.func @transform_7(%arg0: i32) -> (i32, i32) {
    %c0_i32 = arith.constant 0 : i32
    %c0_i32_0 = arith.constant 0 : i32
    %c0_i32_1 = arith.constant 0 : i32
    return %c0_i32, %c0_i32_0 : i32, i32
  }
  func.func @transform_8(%arg0: i32) -> (i32, i32) {
    %c0_i32 = arith.constant 0 : i32
    %c0_i32_0 = arith.constant 0 : i32
    %c0_i32_1 = arith.constant 0 : i32
    return %c0_i32, %c0_i32_0 : i32, i32
  }
  func.func @transform_9(%arg0: i32) -> (i32, i32) {
    %c0_i32 = arith.constant 0 : i32
    %c0_i32_0 = arith.constant 0 : i32
    return %arg0, %c0_i32 : i32, i32
  }
  func.func @transform_10(%arg0: i32) -> (i32, i32) {
    %c0_i32 = arith.constant 0 : i32
    %c0_i32_0 = arith.constant 0 : i32
    return %arg0, %c0_i32 : i32, i32
  }
  func.func @transform_11(%arg0: i32) -> (i32, i32) {
    %c0_i32 = arith.constant 0 : i32
    %c0_i32_0 = arith.constant 0 : i32
    return %arg0, %c0_i32 : i32, i32
  }
  func.func @transform_12(%arg0: i32) -> (i32, i32) {
    %c0_i32 = arith.constant 0 : i32
    %c0_i32_0 = arith.constant 0 : i32
    return %arg0, %c0_i32 : i32, i32
  }
}

</mosaic_0001>

<llo_original>
// kernel: tpu_custom_call.1
$region0: #{tpu_custom_call.1}
  #allocation0 [shape = 'u32[]', space=smem, size = 0x4, offset = 0x4, fixed_abs, tag = 'smem constant byte address 0x4 - core index']
  #allocation1 [shape = 'u32[144,128]{1,0:T(1,128)}', space=vmem, size = 0x12000, scoped, tag = 'internal scratch']
  %s0 = inlined_call_operand.vmem [shape: f32[304,9], index: 0, kind: input, shape index: {}]
  %s1 = inlined_call_operand.hbm [shape: f32[9,32], index: 1, kind: input, shape index: {}]
  %s2 = inlined_call_operand.vmem [shape: f32[1,32], index: 2, kind: input, shape index: {}]
  %s3 = inlined_call_operand.vmem [shape: f32[32,64], index: 3, kind: input, shape index: {}]
  %s4 = inlined_call_operand.vmem [shape: f32[1,64], index: 4, kind: input, shape index: {}]
  %s5 = inlined_call_operand.vmem [shape: f32[64,128], index: 5, kind: input, shape index: {}]
  %s6 = inlined_call_operand.vmem [shape: f32[1,128], index: 6, kind: input, shape index: {}]
  %s7 = inlined_call_operand.vmem [shape: f32[128,256], index: 7, kind: input, shape index: {}]
  %s8 = inlined_call_operand.vmem [shape: f32[1,256], index: 8, kind: input, shape index: {}]
  %s9 = inlined_call_operand.hbm [shape: f32[304,256], index: 9, kind: output, shape index: {0}]
  %s10 = inlined_call_operand.vmem [shape: f32[304,32], index: 10, kind: output, shape index: {1}]
  %s11 = inlined_call_operand.vmem [shape: f32[304,64], index: 11, kind: output, shape index: {2}]
  %s12 = inlined_call_operand.hbm [shape: f32[304,128], index: 12, kind: output, shape index: {3}]
  %13 = xla_tuple %s9, %s10, %s11, %s12
  %s14 = sld [smem:[#allocation0]]
  $region74: #{tpu_custom_call.1} parent=0
    _
  %s16 = ssub.s32 1, %s14
  %s17 = scalar_select 0, %s16, %s14
  $region1: #{tpu_custom_call.1} parent=0
    #allocation2 [shape = 'u8[8192]{0}', space=vmem, size = 0x2000, scoped, tag = 'input window, operand 1, single buffered']
    #allocation3 [shape = 's32[1]{0}', space=sflag, size = 0x4, scoped, tag = 'scoped memory for tpu_custom_call.1']
    #allocation4 [shape = 's32[1]{0}', space=sflag, size = 0x4, scoped, tag = 'scoped memory for tpu_custom_call.1']
    #allocation5 [shape = 'u8[311296]{0}', space=vmem, size = 0x4c000, scoped, tag = 'output window, operand 0, single buffered']
    #allocation6 [shape = 'u8[155648]{0}', space=vmem, size = 0x26000, scoped, tag = 'output window, operand 3, single buffered']
    #allocation7 [shape = 's32[1]{0}', space=sflag, size = 0x4, scoped, tag = 'scoped memory for tpu_custom_call.1']
    %18 = vsyncpa [#allocation3], 0
    %19 = vsyncpa [#allocation4], 0
    %20 = vsyncpa [#allocation7], 0
    // Predicated region
    $region2: #{tpu_custom_call.1} parent=1 // pred_check
      _
    $region3: #{tpu_custom_call.1} parent=1 // pred_check_branch
      %22 = sbr.rel (0) target = $region5
    $region4: #{tpu_custom_call.1} parent=1 // pred_region
      _
    $region5: #{tpu_custom_call.1} parent=1 // pred_fallthru
      _
    // Predicated region
    $region6: #{tpu_custom_call.1} parent=1 // pred_check
      _
    $region7: #{tpu_custom_call.1} parent=1 // pred_check_branch
      %24 = sbr.rel (0) target = $region9
    $region8: #{tpu_custom_call.1} parent=1 // pred_region
      %s26 = ssub.s32 256, 256
      %27 = vsyncadd [#allocation3], %s26
      %s28 = sshll.u32 [#allocation2], 4
      %s29 = int_to_ptr.vmem [resolvable:$true] %s28
      %34 = dma.hbm_to_vmem [thread:$0]  %s1, 256, %s29, [#allocation3], 128, 128, 8
    $region9: #{tpu_custom_call.1} parent=1 // pred_fallthru
      _
    // Predicated region
    $region10: #{tpu_custom_call.1} parent=1 // pred_check
      _
    $region11: #{tpu_custom_call.1} parent=1 // pred_check_branch
      %36 = sbr.rel (0) target = $region13
    $region12: #{tpu_custom_call.1} parent=1 // pred_region
      _
    $region13: #{tpu_custom_call.1} parent=1 // pred_fallthru
      _
    // Predicated region
    $region14: #{tpu_custom_call.1} parent=1 // pred_check
      _
    $region15: #{tpu_custom_call.1} parent=1 // pred_check_branch
      %38 = sbr.rel (0) target = $region17
    $region16: #{tpu_custom_call.1} parent=1 // pred_region
      _
    $region17: #{tpu_custom_call.1} parent=1 // pred_fallthru
      _
    // Predicated region
    $region18: #{tpu_custom_call.1} parent=1 // pred_check
      _
    $region19: #{tpu_custom_call.1} parent=1 // pred_check_branch
      %40 = sbr.rel (0) target = $region21
    $region20: #{tpu_custom_call.1} parent=1 // pred_region
      _
    $region21: #{tpu_custom_call.1} parent=1 // pred_fallthru
      _
    // Predicated region
    $region22: #{tpu_custom_call.1} parent=1 // pred_check
      _
    $region23: #{tpu_custom_call.1} parent=1 // pred_check_branch
      %42 = sbr.rel (0) target = $region25
    $region24: #{tpu_custom_call.1} parent=1 // pred_region
      _
    $region25: #{tpu_custom_call.1} parent=1 // pred_fallthru
      _
    // Predicated region
    $region26: #{tpu_custom_call.1} parent=1 // pred_check
      _
    $region27: #{tpu_custom_call.1} parent=1 // pred_check_branch
      %44 = sbr.rel (0) target = $region29
    $region28: #{tpu_custom_call.1} parent=1 // pred_region
      _
    $region29: #{tpu_custom_call.1} parent=1 // pred_fallthru
      _
    // Predicated region
    $region30: #{tpu_custom_call.1} parent=1 // pred_check
      _
    $region31: #{tpu_custom_call.1} parent=1 // pred_check_branch
      %46 = sbr.rel (0) target = $region33
    $region32: #{tpu_custom_call.1} parent=1 // pred_region
      _
    $region33: #{tpu_custom_call.1} parent=1 // pred_fallthru
      _
    // Predicated region
    $region34: #{tpu_custom_call.1} parent=1 // pred_check
      _
    $region35: #{tpu_custom_call.1} parent=1 // pred_check_branch
      %48 = sbr.rel (0) target = $region37
    $region36: #{tpu_custom_call.1} parent=1 // pred_region
      _
    $region37: #{tpu_custom_call.1} parent=1 // pred_fallthru
      _
    // Predicated region
    $region38: #{tpu_custom_call.1} parent=1 // pred_check
      _
    $region39: #{tpu_custom_call.1} parent=1 // pred_check_branch
      %50 = sbr.rel (0) target = $region41
    $region40: #{tpu_custom_call.1} parent=1 // pred_region
      %51 = dma.done [#allocation3], 256
    $region41: #{tpu_custom_call.1} parent=1 // pred_fallthru
      _
    %v52 = vld [vmem:[%s0] sm:$0xff]
    %v53 = vld [vmem:[%s0 + $0x8] sm:$0xff]
    %v54 = vld [vmem:[%s0 + $0x10] sm:$0xff]
    %v55 = vld [vmem:[%s0 + $0x18] sm:$0xff]
    %v56 = vld [vmem:[%s0 + $0x20] sm:$0xff]
    %v57 = vld [vmem:[%s0 + $0x28] sm:$0xff]
    %v58 = vld [vmem:[%s0 + $0x30] sm:$0xff]
    %v59 = vld [vmem:[%s0 + $0x38] sm:$0xff]
    %v60 = vld [vmem:[%s0 + $0x40] sm:$0xff]
    %v61 = vld [vmem:[%s0 + $0x48] sm:$0xff]
    %v62 = vld [vmem:[%s0 + $0x50] sm:$0xff]
    %v63 = vld [vmem:[%s0 + $0x58] sm:$0xff]
    %v64 = vld [vmem:[%s0 + $0x60] sm:$0xff]
    %v65 = vld [vmem:[%s0 + $0x68] sm:$0xff]
    %v66 = vld [vmem:[%s0 + $0x70] sm:$0xff]
    %v67 = vld [vmem:[%s0 + $0x78] sm:$0xff]
    %v68 = vld [vmem:[%s0 + $0x80] sm:$0xff]
    %v69 = vld [vmem:[%s0 + $0x88] sm:$0xff]
    %v70 = vld [vmem:[%s0 + $0x90] sm:$0xff]
    %v71 = vld [vmem:[%s0 + $0x98] sm:$0xff]
    %v72 = vld [vmem:[%s0 + $0xa0] sm:$0xff]
    %v73 = vld [vmem:[%s0 + $0xa8] sm:$0xff]
    %v74 = vld [vmem:[%s0 + $0xb0] sm:$0xff]
    %v75 = vld [vmem:[%s0 + $0xb8] sm:$0xff]
    %v76 = vld [vmem:[%s0 + $0xc0] sm:$0xff]
    %v77 = vld [vmem:[%s0 + $0xc8] sm:$0xff]
    %v78 = vld [vmem:[%s0 + $0xd0] sm:$0xff]
    %v79 = vld [vmem:[%s0 + $0xd8] sm:$0xff]
    %v80 = vld [vmem:[%s0 + $0xe0] sm:$0xff]
    %v81 = vld [vmem:[%s0 + $0xe8] sm:$0xff]
    %v82 = vld [vmem:[%s0 + $0xf0] sm:$0xff]
    %v83 = vld [vmem:[%s0 + $0xf8] sm:$0xff]
    %v84 = vld [vmem:[%s0 + $0x100] sm:$0xff]
    %v85 = vld [vmem:[%s0 + $0x108] sm:$0xff]
    %v86 = vld [vmem:[%s0 + $0x110] sm:$0xff]
    %v87 = vld [vmem:[%s0 + $0x118] sm:$0xff]
    %v88 = vld [vmem:[%s0 + $0x120] sm:$0xff]
    %v89 = vld [vmem:[%s0 + $0x128] sm:$0xff]
    %v90 = vld [vmem:[#allocation2] sm:$0xff]
    %v91 = vld [vmem:[#allocation2 + $0x8] sm:$0x1]
    %v92 = vld [vmem:[%s2] sm:$0x1]
    %v94 = vlaneseq
    %v95 = vshrl.u32 %v94, 7
    %v96 = vsub.s32 0, %v95
    %v97 = vrot.slane %v92, %v96
    %vm99 = vcmask 72704
    %v101 = vsel %vm99, %v52, 0
    %v104 = vsel %vm99, %v53, 0
    %v107 = vsel %vm99, %v54, 0
    %v110 = vsel %vm99, %v55, 0
    %v113 = vsel %vm99, %v56, 0
    %v116 = vsel %vm99, %v57, 0
    %v119 = vsel %vm99, %v58, 0
    %v122 = vsel %vm99, %v59, 0
    %v125 = vsel %vm99, %v60, 0
    %v128 = vsel %vm99, %v61, 0
    %v131 = vsel %vm99, %v62, 0
    %v134 = vsel %vm99, %v63, 0
    %v137 = vsel %vm99, %v64, 0
    %v140 = vsel %vm99, %v65, 0
    %v143 = vsel %vm99, %v66, 0
    %v146 = vsel %vm99, %v67, 0
    %v149 = vsel %vm99, %v68, 0
    %v152 = vsel %vm99, %v69, 0
    %v155 = vsel %vm99, %v70, 0
    %v158 = vsel %vm99, %v71, 0
    %v161 = vsel %vm99, %v72, 0
    %v164 = vsel %vm99, %v73, 0
    %v167 = vsel %vm99, %v74, 0
    %v170 = vsel %vm99, %v75, 0
    %v173 = vsel %vm99, %v76, 0
    %v176 = vsel %vm99, %v77, 0
    %v179 = vsel %vm99, %v78, 0
    %v182 = vsel %vm99, %v79, 0
    %v185 = vsel %vm99, %v80, 0
    %v188 = vsel %vm99, %v81, 0
    %v191 = vsel %vm99, %v82, 0
    %v194 = vsel %vm99, %v83, 0
    %v197 = vsel %vm99, %v84, 0
    %v200 = vsel %vm99, %v85, 0
    %v203 = vsel %vm99, %v86, 0
    %v206 = vsel %vm99, %v87, 0
    %v209 = vsel %vm99, %v88, 0
    %v212 = vsel %vm99, %v89, 0
    %vm214 = vcmask 1040384
    %v216 = vsel %vm214, %v91, 0
    %218 = vmatprep.subr.mxu0 0.0
    %219 = vmatpush1.msra.mxu0 0.0
    %220 = vmatprep.subr.mxu0 0.0
    %221 = vmatpush1.msra.mxu0 0.0
    %222 = vmatprep.subr.mxu0 0.0
    %223 = vmatpush1.msra.mxu0 0.0
    %224 = vmatprep.subr.mxu0 0.0
    %225 = vmatpush1.msra.mxu0 0.0
    %226 = vmatprep.subr.mxu0 0.0
    %227 = vmatpush1.msra.mxu0 0.0
    %228 = vmatprep.subr.mxu0 0.0
    %229 = vmatpush1.msra.mxu0 0.0
    %230 = vmatprep.subr.mxu0 0.0
    %231 = vmatpush1.msra.mxu0 0.0
    %232 = vmatprep.subr.mxu0 0.0
    %233 = vmatpush1.msra.mxu0 0.0
    %234 = vmatprep.subr.mxu0 0.0
    %235 = vmatpush1.msra.mxu0 0.0
    %236 = vmatprep.subr.mxu0 0.0
    %237 = vmatpush1.msra.mxu0 0.0
    %238 = vmatprep.subr.mxu0 0.0
    %239 = vmatpush1.msra.mxu0 0.0
    %240 = vmatprep.subr.mxu0 0.0
    %241 = vmatpush1.msra.mxu0 0.0
    %242 = vmatprep.subr.mxu0 0.0
    %243 = vmatpush1.msra.mxu0 0.0
    %244 = vmatprep.subr.mxu0 0.0
    %245 = vmatpush1.msra.mxu0 0.0
    %246 = vmatprep.subr.mxu0 0.0
    %247 = vmatpush1.msra.mxu0 %v216
    %248 = vmatprep.subr.mxu0 0.0
    %249 = vmatpush1.msra.mxu0 %v90
    %250 = vmatprep.subr.mxu0 0.0
    %251 = vmatpush2.msra.mxu0 0.0
    %252 = vmatprep.subr.mxu0 0.0
    %253 = vmatpush2.msra.mxu0 0.0
    %254 = vmatprep.subr.mxu0 0.0
    %255 = vmatpush2.msra.mxu0 0.0
    %256 = vmatprep.subr.mxu0 0.0
    %257 = vmatpush2.msra.mxu0 0.0
    %258 = vmatprep.subr.mxu0 0.0
    %259 = vmatpush2.msra.mxu0 0.0
    %260 = vmatprep.subr.mxu0 0.0
    %261 = vmatpush2.msra.mxu0 0.0
    %262 = vmatprep.subr.mxu0 0.0
    %263 = vmatpush2.msra.mxu0 0.0
    %264 = vmatprep.subr.mxu0 0.0
    %265 = vmatpush2.msra.mxu0 0.0
    %266 = vmatprep.subr.mxu0 0.0
    %267 = vmatpush2.msra.mxu0 0.0
    %268 = vmatprep.subr.mxu0 0.0
    %269 = vmatpush2.msra.mxu0 0.0
    %270 = vmatprep.subr.mxu0 0.0
    %271 = vmatpush2.msra.mxu0 0.0
    %272 = vmatprep.subr.mxu0 0.0
    %273 = vmatpush2.msra.mxu0 0.0
    %274 = vmatprep.subr.mxu0 0.0
    %275 = vmatpush2.msra.mxu0 0.0
    %276 = vmatprep.subr.mxu0 0.0
    %277 = vmatpush2.msra.mxu0 0.0
    %278 = vmatprep.subr.mxu0 0.0
    %279 = vmatpush2.msra.mxu0 0.0
    %280 = vmatprep.subr.mxu0 0.0
    %281 = vmatpush2.msra.mxu0 0.0
    %282 = vmatprep.mubr.f32.mxu0 0.0
    %283 = vmatmul.mubr.f32.gmra.mxu0 %v101
    %v284 = vpop.f32.mrf.mxu0
    %v285 = vadd.f32 %v97, %v284
    %v286 = vpop.f32.mrf.mxu0
    %287 = vmatprep.mubr.f32.mxu0 0.0
    %288 = vmatmul.mubr.f32.gmra.mxu0 %v104
    %v289 = vpop.f32.mrf.mxu0
    %v290 = vadd.f32 %v97, %v289
    %v291 = vpop.f32.mrf.mxu0
    %292 = vmatprep.mubr.f32.mxu0 0.0
    %293 = vmatmul.mubr.f32.gmra.mxu0 %v107
    %v294 = vpop.f32.mrf.mxu0
    %v295 = vadd.f32 %v97, %v294
    %v296 = vpop.f32.mrf.mxu0
    %297 = vmatprep.mubr.f32.mxu0 0.0
    %298 = vmatmul.mubr.f32.gmra.mxu0 %v110
    %v299 = vpop.f32.mrf.mxu0
    %v300 = vadd.f32 %v97, %v299
    %v301 = vpop.f32.mrf.mxu0
    %302 = vmatprep.mubr.f32.mxu0 0.0
    %303 = vmatmul.mubr.f32.gmra.mxu0 %v113
    %v304 = vpop.f32.mrf.mxu0
    %v305 = vadd.f32 %v97, %v304
    %v306 = vpop.f32.mrf.mxu0
    %307 = vmatprep.mubr.f32.mxu0 0.0
    %308 = vmatmul.mubr.f32.gmra.mxu0 %v116
    %v309 = vpop.f32.mrf.mxu0
    %v310 = vadd.f32 %v97, %v309
    %v311 = vpop.f32.mrf.mxu0
    %312 = vmatprep.mubr.f32.mxu0 0.0
    %313 = vmatmul.mubr.f32.gmra.mxu0 %v119
    %v314 = vpop.f32.mrf.mxu0
    %v315 = vadd.f32 %v97, %v314
    %v316 = vpop.f32.mrf.mxu0
    %317 = vmatprep.mubr.f32.mxu0 0.0
    %318 = vmatmul.mubr.f32.gmra.mxu0 %v122
    %v319 = vpop.f32.mrf.mxu0
    %v320 = vadd.f32 %v97, %v319
    %v321 = vpop.f32.mrf.mxu0
    %322 = vmatprep.mubr.f32.mxu0 0.0
    %323 = vmatmul.mubr.f32.gmra.mxu0 %v125
    %v324 = vpop.f32.mrf.mxu0
    %v325 = vadd.f32 %v97, %v324
    %v326 = vpop.f32.mrf.mxu0
    %327 = vmatprep.mubr.f32.mxu0 0.0
    %328 = vmatmul.mubr.f32.gmra.mxu0 %v128
    %v329 = vpop.f32.mrf.mxu0
    %v330 = vadd.f32 %v97, %v329
    %v331 = vpop.f32.mrf.mxu0
    %332 = vmatprep.mubr.f32.mxu0 0.0
    %333 = vmatmul.mubr.f32.gmra.mxu0 %v131
    %v334 = vpop.f32.mrf.mxu0
    %v335 = vadd.f32 %v97, %v334
    %v336 = vpop.f32.mrf.mxu0
    %337 = vmatprep.mubr.f32.mxu0 0.0
    %338 = vmatmul.mubr.f32.gmra.mxu0 %v134
    %v339 = vpop.f32.mrf.mxu0
    %v340 = vadd.f32 %v97, %v339
    %v341 = vpop.f32.mrf.mxu0
    %342 = vmatprep.mubr.f32.mxu0 0.0
    %343 = vmatmul.mubr.f32.gmra.mxu0 %v137
    %v344 = vpop.f32.mrf.mxu0
    %v345 = vadd.f32 %v97, %v344
    %v346 = vpop.f32.mrf.mxu0
    %347 = vmatprep.mubr.f32.mxu0 0.0
    %348 = vmatmul.mubr.f32.gmra.mxu0 %v140
    %v349 = vpop.f32.mrf.mxu0
    %v350 = vadd.f32 %v97, %v349
    %v351 = vpop.f32.mrf.mxu0
    %352 = vmatprep.mubr.f32.mxu0 0.0
    %353 = vmatmul.mubr.f32.gmra.mxu0 %v143
    %v354 = vpop.f32.mrf.mxu0
    %v355 = vadd.f32 %v97, %v354
    %v356 = vpop.f32.mrf.mxu0
    %357 = vmatprep.mubr.f32.mxu0 0.0
    %358 = vmatmul.mubr.f32.gmra.mxu0 %v146
    %v359 = vpop.f32.mrf.mxu0
    %v360 = vadd.f32 %v97, %v359
    %v361 = vpop.f32.mrf.mxu0
    %362 = vmatprep.mubr.f32.mxu0 0.0
    %363 = vmatmul.mubr.f32.gmra.mxu0 %v149
    %v364 = vpop.f32.mrf.mxu0
    %v365 = vadd.f32 %v97, %v364
    %v366 = vpop.f32.mrf.mxu0
    %367 = vmatprep.mubr.f32.mxu0 0.0
    %368 = vmatmul.mubr.f32.gmra.mxu0 %v152
    %v369 = vpop.f32.mrf.mxu0
    %v370 = vadd.f32 %v97, %v369
    %v371 = vpop.f32.mrf.mxu0
    %372 = vmatprep.mubr.f32.mxu0 0.0
    %373 = vmatmul.mubr.f32.gmra.mxu0 %v155
    %v374 = vpop.f32.mrf.mxu0
    %v375 = vadd.f32 %v97, %v374
    %v376 = vpop.f32.mrf.mxu0
    %377 = vmatprep.mubr.f32.mxu0 0.0
    %378 = vmatmul.mubr.f32.gmra.mxu0 %v158
    %v379 = vpop.f32.mrf.mxu0
    %v380 = vadd.f32 %v97, %v379
    %v381 = vpop.f32.mrf.mxu0
    %382 = vmatprep.mubr.f32.mxu0 0.0
    %383 = vmatmul.mubr.f32.gmra.mxu0 %v161
    %v384 = vpop.f32.mrf.mxu0
    %v385 = vadd.f32 %v97, %v384
    %v386 = vpop.f32.mrf.mxu0
    %387 = vmatprep.mubr.f32.mxu0 0.0
    %388 = vmatmul.mubr.f32.gmra.mxu0 %v164
    %v389 = vpop.f32.mrf.mxu0
    %v390 = vadd.f32 %v97, %v389
    %v391 = vpop.f32.mrf.mxu0
    %392 = vmatprep.mubr.f32.mxu0 0.0
    %393 = vmatmul.mubr.f32.gmra.mxu0 %v167
    %v394 = vpop.f32.mrf.mxu0
    %v395 = vadd.f32 %v97, %v394
    %v396 = vpop.f32.mrf.mxu0
    %397 = vmatprep.mubr.f32.mxu0 0.0
    %398 = vmatmul.mubr.f32.gmra.mxu0 %v170
    %v399 = vpop.f32.mrf.mxu0
    %v400 = vadd.f32 %v97, %v399
    %v401 = vpop.f32.mrf.mxu0
    %402 = vmatprep.mubr.f32.mxu0 0.0
    %403 = vmatmul.mubr.f32.gmra.mxu0 %v173
    %v404 = vpop.f32.mrf.mxu0
    %v405 = vadd.f32 %v97, %v404
    %v406 = vpop.f32.mrf.mxu0
    %407 = vmatprep.mubr.f32.mxu0 0.0
    %408 = vmatmul.mubr.f32.gmra.mxu0 %v176
    %v409 = vpop.f32.mrf.mxu0
    %v410 = vadd.f32 %v97, %v409
    %v411 = vpop.f32.mrf.mxu0
    %412 = vmatprep.mubr.f32.mxu0 0.0
    %413 = vmatmul.mubr.f32.gmra.mxu0 %v179
    %v414 = vpop.f32.mrf.mxu0
    %v415 = vadd.f32 %v97, %v414
    %v416 = vpop.f32.mrf.mxu0
    %417 = vmatprep.mubr.f32.mxu0 0.0
    %418 = vmatmul.mubr.f32.gmra.mxu0 %v182
    %v419 = vpop.f32.mrf.mxu0
    %v420 = vadd.f32 %v97, %v419
    %v421 = vpop.f32.mrf.mxu0
    %422 = vmatprep.mubr.f32.mxu0 0.0
    %423 = vmatmul.mubr.f32.gmra.mxu0 %v185
    %v424 = vpop.f32.mrf.mxu0
    %v425 = vadd.f32 %v97, %v424
    %v426 = vpop.f32.mrf.mxu0
    %427 = vmatprep.mubr.f32.mxu0 0.0
    %428 = vmatmul.mubr.f32.gmra.mxu0 %v188
    %v429 = vpop.f32.mrf.mxu0
    %v430 = vadd.f32 %v97, %v429
    %v431 = vpop.f32.mrf.mxu0
    %432 = vmatprep.mubr.f32.mxu0 0.0
    %433 = vmatmul.mubr.f32.gmra.mxu0 %v191
    %v434 = vpop.f32.mrf.mxu0
    %v435 = vadd.f32 %v97, %v434
    %v436 = vpop.f32.mrf.mxu0
    %437 = vmatprep.mubr.f32.mxu0 0.0
    %438 = vmatmul.mubr.f32.gmra.mxu0 %v194
    %v439 = vpop.f32.mrf.mxu0
    %v440 = vadd.f32 %v97, %v439
    %v441 = vpop.f32.mrf.mxu0
    %442 = vmatprep.mubr.f32.mxu0 0.0
    %443 = vmatmul.mubr.f32.gmra.mxu0 %v197
    %v444 = vpop.f32.mrf.mxu0
    %v445 = vadd.f32 %v97, %v444
    %v446 = vpop.f32.mrf.mxu0
    %447 = vmatprep.mubr.f32.mxu0 0.0
    %448 = vmatmul.mubr.f32.gmra.mxu0 %v200
    %v449 = vpop.f32.mrf.mxu0
    %v450 = vadd.f32 %v97, %v449
    %v451 = vpop.f32.mrf.mxu0
    %452 = vmatprep.mubr.f32.mxu0 0.0
    %453 = vmatmul.mubr.f32.gmra.mxu0 %v203
    %v454 = vpop.f32.mrf.mxu0
    %v455 = vadd.f32 %v97, %v454
    %v456 = vpop.f32.mrf.mxu0
    %457 = vmatprep.mubr.f32.mxu0 0.0
    %458 = vmatmul.mubr.f32.gmra.mxu0 %v206
    %v459 = vpop.f32.mrf.mxu0
    %v460 = vadd.f32 %v97, %v459
    %v461 = vpop.f32.mrf.mxu0
    %462 = vmatprep.mubr.f32.mxu0 0.0
    %463 = vmatmul.mubr.f32.gmra.mxu0 %v209
    %v464 = vpop.f32.mrf.mxu0
    %v465 = vadd.f32 %v97, %v464
    %v466 = vpop.f32.mrf.mxu0
    %467 = vmatprep.mubr.f32.mxu0 0.0
    %468 = vmatmul.mubr.f32.gmra.mxu0 %v212
    %v469 = vpop.f32.mrf.mxu0
    %v470 = vadd.f32 %v97, %v469
    %v471 = vpop.f32.mrf.mxu0
    %472 = vdwg.mxu0
    %v473 = vmax.f32 %v285, 0.0
    %v474 = vmax.f32 %v290, 0.0
    %v475 = vmax.f32 %v295, 0.0
    %v476 = vmax.f32 %v300, 0.0
    %v477 = vmax.f32 %v305, 0.0
    %v478 = vmax.f32 %v310, 0.0
    %v479 = vmax.f32 %v315, 0.0
    %v480 = vmax.f32 %v320, 0.0
    %v481 = vmax.f32 %v325, 0.0
    %v482 = vmax.f32 %v330, 0.0
    %v483 = vmax.f32 %v335, 0.0
    %v484 = vmax.f32 %v340, 0.0
    %v485 = vmax.f32 %v345, 0.0
    %v486 = vmax.f32 %v350, 0.0
    %v487 = vmax.f32 %v355, 0.0
    %v488 = vmax.f32 %v360, 0.0
    %v489 = vmax.f32 %v365, 0.0
    %v490 = vmax.f32 %v370, 0.0
    %v491 = vmax.f32 %v375, 0.0
    %v492 = vmax.f32 %v380, 0.0
    %v493 = vmax.f32 %v385, 0.0
    %v494 = vmax.f32 %v390, 0.0
    %v495 = vmax.f32 %v395, 0.0
    %v496 = vmax.f32 %v400, 0.0
    %v497 = vmax.f32 %v405, 0.0
    %v498 = vmax.f32 %v410, 0.0
    %v499 = vmax.f32 %v415, 0.0
    %v500 = vmax.f32 %v420, 0.0
    %v501 = vmax.f32 %v425, 0.0
    %v502 = vmax.f32 %v430, 0.0
    %v503 = vmax.f32 %v435, 0.0
    %v504 = vmax.f32 %v440, 0.0
    %v505 = vmax.f32 %v445, 0.0
    %v506 = vmax.f32 %v450, 0.0
    %v507 = vmax.f32 %v455, 0.0
    %v508 = vmax.f32 %v460, 0.0
    %v509 = vmax.f32 %v465, 0.0
    %v510 = vmax.f32 %v470, 0.0
    %v511 = vld [vmem:[%s3] sm:$0xff]
    %v512 = vld [vmem:[%s3 + $0x8] sm:$0xff]
    %v513 = vld [vmem:[%s3 + $0x10] sm:$0xff]
    %v514 = vld [vmem:[%s3 + $0x18] sm:$0xff]
    %v515 = vld [vmem:[%s4] sm:$0x1]
    %v517 = vlaneseq
    %v518 = vshrl.u32 %v517, 7
    %v519 = vsub.s32 0, %v518
    %v520 = vrot.slane %v515, %v519
    %vm522 = vcmask 261120
    %v524 = vsel %vm522, %v473, 0
    %v527 = vsel %vm522, %v474, 0
    %v530 = vsel %vm522, %v475, 0
    %v533 = vsel %vm522, %v476, 0
    %v536 = vsel %vm522, %v477, 0
    %v539 = vsel %vm522, %v478, 0
    %v542 = vsel %vm522, %v479, 0
    %v545 = vsel %vm522, %v480, 0
    %v548 = vsel %vm522, %v481, 0
    %v551 = vsel %vm522, %v482, 0
    %v554 = vsel %vm522, %v483, 0
    %v557 = vsel %vm522, %v484, 0
    %v560 = vsel %vm522, %v485, 0
    %v563 = vsel %vm522, %v486, 0
    %v566 = vsel %vm522, %v487, 0
    %v569 = vsel %vm522, %v488, 0
    %v572 = vsel %vm522, %v489, 0
    %v575 = vsel %vm522, %v490, 0
    %v578 = vsel %vm522, %v491, 0
    %v581 = vsel %vm522, %v492, 0
    %v584 = vsel %vm522, %v493, 0
    %v587 = vsel %vm522, %v494, 0
    %v590 = vsel %vm522, %v495, 0
    %v593 = vsel %vm522, %v496, 0
    %v596 = vsel %vm522, %v497, 0
    %v599 = vsel %vm522, %v498, 0
    %v602 = vsel %vm522, %v499, 0
    %v605 = vsel %vm522, %v500, 0
    %v608 = vsel %vm522, %v501, 0
    %v611 = vsel %vm522, %v502, 0
    %v614 = vsel %vm522, %v503, 0
    %v617 = vsel %vm522, %v504, 0
    %v620 = vsel %vm522, %v505, 0
    %v623 = vsel %vm522, %v506, 0
    %v626 = vsel %vm522, %v507, 0
    %v629 = vsel %vm522, %v508, 0
    %v632 = vsel %vm522, %v509, 0
    %v635 = vsel %vm522, %v510, 0
    %637 = vmatprep.subr.mxu0 0.0
    %638 = vmatpush1.msra.mxu0 0.0
    %639 = vmatprep.subr.mxu0 0.0
    %640 = vmatpush1.msra.mxu0 0.0
    %641 = vmatprep.subr.mxu0 0.0
    %642 = vmatpush1.msra.mxu0 0.0
    %643 = vmatprep.subr.mxu0 0.0
    %644 = vmatpush1.msra.mxu0 0.0
    %645 = vmatprep.subr.mxu0 0.0
    %646 = vmatpush1.msra.mxu0 0.0
    %647 = vmatprep.subr.mxu0 0.0
    %648 = vmatpush1.msra.mxu0 0.0
    %649 = vmatprep.subr.mxu0 0.0
    %650 = vmatpush1.msra.mxu0 0.0
    %651 = vmatprep.subr.mxu0 0.0
    %652 = vmatpush1.msra.mxu0 0.0
    %653 = vmatprep.subr.mxu0 0.0
    %654 = vmatpush1.msra.mxu0 0.0
    %655 = vmatprep.subr.mxu0 0.0
    %656 = vmatpush1.msra.mxu0 0.0
    %657 = vmatprep.subr.mxu0 0.0
    %658 = vmatpush1.msra.mxu0 0.0
    %659 = vmatprep.subr.mxu0 0.0
    %660 = vmatpush1.msra.mxu0 0.0
    %661 = vmatprep.subr.mxu0 0.0
    %662 = vmatpush1.msra.mxu0 %v514
    %663 = vmatprep.subr.mxu0 0.0
    %664 = vmatpush1.msra.mxu0 %v513
    %665 = vmatprep.subr.mxu0 0.0
    %666 = vmatpush1.msra.mxu0 %v512
    %667 = vmatprep.subr.mxu0 0.0
    %668 = vmatpush1.msra.mxu0 %v511
    %669 = vmatprep.subr.mxu0 0.0
    %670 = vmatpush2.msra.mxu0 0.0
    %671 = vmatprep.subr.mxu0 0.0
    %672 = vmatpush2.msra.mxu0 0.0
    %673 = vmatprep.subr.mxu0 0.0
    %674 = vmatpush2.msra.mxu0 0.0
    %675 = vmatprep.subr.mxu0 0.0
    %676 = vmatpush2.msra.mxu0 0.0
    %677 = vmatprep.subr.mxu0 0.0
    %678 = vmatpush2.msra.mxu0 0.0
    %679 = vmatprep.subr.mxu0 0.0
    %680 = vmatpush2.msra.mxu0 0.0
    %681 = vmatprep.subr.mxu0 0.0
    %682 = vmatpush2.msra.mxu0 0.0
    %683 = vmatprep.subr.mxu0 0.0
    %684 = vmatpush2.msra.mxu0 0.0
    %685 = vmatprep.subr.mxu0 0.0
    %686 = vmatpush2.msra.mxu0 0.0
    %687 = vmatprep.subr.mxu0 0.0
    %688 = vmatpush2.msra.mxu0 0.0
    %689 = vmatprep.subr.mxu0 0.0
    %690 = vmatpush2.msra.mxu0 0.0
    %691 = vmatprep.subr.mxu0 0.0
    %692 = vmatpush2.msra.mxu0 0.0
    %693 = vmatprep.subr.mxu0 0.0
    %694 = vmatpush2.msra.mxu0 0.0
    %695 = vmatprep.subr.mxu0 0.0
    %696 = vmatpush2.msra.mxu0 0.0
    %697 = vmatprep.subr.mxu0 0.0
    %698 = vmatpush2.msra.mxu0 0.0
    %699 = vmatprep.subr.mxu0 0.0
    %700 = vmatpush2.msra.mxu0 0.0
    %701 = vmatprep.mubr.f32.mxu0 0.0
    %702 = vmatmul.mubr.f32.gmra.mxu0 %v524
    %v703 = vpop.f32.mrf.mxu0
    %v704 = vadd.f32 %v520, %v703
    %v705 = vpop.f32.mrf.mxu0
    %706 = vmatprep.mubr.f32.mxu0 0.0
    %707 = vmatmul.mubr.f32.gmra.mxu0 %v527
    %v708 = vpop.f32.mrf.mxu0
    %v709 = vadd.f32 %v520, %v708
    %v710 = vpop.f32.mrf.mxu0
    %711 = vmatprep.mubr.f32.mxu0 0.0
    %712 = vmatmul.mubr.f32.gmra.mxu0 %v530
    %v713 = vpop.f32.mrf.mxu0
    %v714 = vadd.f32 %v520, %v713
    %v715 = vpop.f32.mrf.mxu0
    %716 = vmatprep.mubr.f32.mxu0 0.0
    %717 = vmatmul.mubr.f32.gmra.mxu0 %v533
    %v718 = vpop.f32.mrf.mxu0
    %v719 = vadd.f32 %v520, %v718
    %v720 = vpop.f32.mrf.mxu0
    %721 = vmatprep.mubr.f32.mxu0 0.0
    %722 = vmatmul.mubr.f32.gmra.mxu0 %v536
    %v723 = vpop.f32.mrf.mxu0
    %v724 = vadd.f32 %v520, %v723
    %v725 = vpop.f32.mrf.mxu0
    %726 = vmatprep.mubr.f32.mxu0 0.0
    %727 = vmatmul.mubr.f32.gmra.mxu0 %v539
    %v728 = vpop.f32.mrf.mxu0
    %v729 = vadd.f32 %v520, %v728
    %v730 = vpop.f32.mrf.mxu0
    %731 = vmatprep.mubr.f32.mxu0 0.0
    %732 = vmatmul.mubr.f32.gmra.mxu0 %v542
    %v733 = vpop.f32.mrf.mxu0
    %v734 = vadd.f32 %v520, %v733
    %v735 = vpop.f32.mrf.mxu0
    %736 = vmatprep.mubr.f32.mxu0 0.0
    %737 = vmatmul.mubr.f32.gmra.mxu0 %v545
    %v738 = vpop.f32.mrf.mxu0
    %v739 = vadd.f32 %v520, %v738
    %v740 = vpop.f32.mrf.mxu0
    %741 = vmatprep.mubr.f32.mxu0 0.0
    %742 = vmatmul.mubr.f32.gmra.mxu0 %v548
    %v743 = vpop.f32.mrf.mxu0
    %v744 = vadd.f32 %v520, %v743
    %v745 = vpop.f32.mrf.mxu0
    %746 = vmatprep.mubr.f32.mxu0 0.0
    %747 = vmatmul.mubr.f32.gmra.mxu0 %v551
    %v748 = vpop.f32.mrf.mxu0
    %v749 = vadd.f32 %v520, %v748
    %v750 = vpop.f32.mrf.mxu0
    %751 = vmatprep.mubr.f32.mxu0 0.0
    %752 = vmatmul.mubr.f32.gmra.mxu0 %v554
    %v753 = vpop.f32.mrf.mxu0
    %v754 = vadd.f32 %v520, %v753
    %v755 = vpop.f32.mrf.mxu0
    %756 = vmatprep.mubr.f32.mxu0 0.0
    %757 = vmatmul.mubr.f32.gmra.mxu0 %v557
    %v758 = vpop.f32.mrf.mxu0
    %v759 = vadd.f32 %v520, %v758
    %v760 = vpop.f32.mrf.mxu0
    %761 = vmatprep.mubr.f32.mxu0 0.0
    %762 = vmatmul.mubr.f32.gmra.mxu0 %v560
    %v763 = vpop.f32.mrf.mxu0
    %v764 = vadd.f32 %v520, %v763
    %v765 = vpop.f32.mrf.mxu0
    %766 = vmatprep.mubr.f32.mxu0 0.0
    %767 = vmatmul.mubr.f32.gmra.mxu0 %v563
    %v768 = vpop.f32.mrf.mxu0
    %v769 = vadd.f32 %v520, %v768
    %v770 = vpop.f32.mrf.mxu0
    %771 = vmatprep.mubr.f32.mxu0 0.0
    %772 = vmatmul.mubr.f32.gmra.mxu0 %v566
    %v773 = vpop.f32.mrf.mxu0
    %v774 = vadd.f32 %v520, %v773
    %v775 = vpop.f32.mrf.mxu0
    %776 = vmatprep.mubr.f32.mxu0 0.0
    %777 = vmatmul.mubr.f32.gmra.mxu0 %v569
    %v778 = vpop.f32.mrf.mxu0
    %v779 = vadd.f32 %v520, %v778
    %v780 = vpop.f32.mrf.mxu0
    %781 = vmatprep.mubr.f32.mxu0 0.0
    %782 = vmatmul.mubr.f32.gmra.mxu0 %v572
    %v783 = vpop.f32.mrf.mxu0
    %v784 = vadd.f32 %v520, %v783
    %v785 = vpop.f32.mrf.mxu0
    %786 = vmatprep.mubr.f32.mxu0 0.0
    %787 = vmatmul.mubr.f32.gmra.mxu0 %v575
    %v788 = vpop.f32.mrf.mxu0
    %v789 = vadd.f32 %v520, %v788
    %v790 = vpop.f32.mrf.mxu0
    %791 = vmatprep.mubr.f32.mxu0 0.0
    %792 = vmatmul.mubr.f32.gmra.mxu0 %v578
    %v793 = vpop.f32.mrf.mxu0
    %v794 = vadd.f32 %v520, %v793
    %v795 = vpop.f32.mrf.mxu0
    %796 = vmatprep.mubr.f32.mxu0 0.0
    %797 = vmatmul.mubr.f32.gmra.mxu0 %v581
    %v798 = vpop.f32.mrf.mxu0
    %v799 = vadd.f32 %v520, %v798
    %v800 = vpop.f32.mrf.mxu0
    %801 = vmatprep.mubr.f32.mxu0 0.0
    %802 = vmatmul.mubr.f32.gmra.mxu0 %v584
    %v803 = vpop.f32.mrf.mxu0
    %v804 = vadd.f32 %v520, %v803
    %v805 = vpop.f32.mrf.mxu0
    %806 = vmatprep.mubr.f32.mxu0 0.0
    %807 = vmatmul.mubr.f32.gmra.mxu0 %v587
    %v808 = vpop.f32.mrf.mxu0
    %v809 = vadd.f32 %v520, %v808
    %v810 = vpop.f32.mrf.mxu0
    %811 = vmatprep.mubr.f32.mxu0 0.0
    %812 = vmatmul.mubr.f32.gmra.mxu0 %v590
    %v813 = vpop.f32.mrf.mxu0
    %v814 = vadd.f32 %v520, %v813
    %v815 = vpop.f32.mrf.mxu0
    %816 = vmatprep.mubr.f32.mxu0 0.0
    %817 = vmatmul.mubr.f32.gmra.mxu0 %v593
    %v818 = vpop.f32.mrf.mxu0
    %v819 = vadd.f32 %v520, %v818
    %v820 = vpop.f32.mrf.mxu0
    %821 = vmatprep.mubr.f32.mxu0 0.0
    %822 = vmatmul.mubr.f32.gmra.mxu0 %v596
    %v823 = vpop.f32.mrf.mxu0
    %v824 = vadd.f32 %v520, %v823
    %v825 = vpop.f32.mrf.mxu0
    %826 = vmatprep.mubr.f32.mxu0 0.0
    %827 = vmatmul.mubr.f32.gmra.mxu0 %v599
    %v828 = vpop.f32.mrf.mxu0
    %v829 = vadd.f32 %v520, %v828
    %v830 = vpop.f32.mrf.mxu0
    %831 = vmatprep.mubr.f32.mxu0 0.0
    %832 = vmatmul.mubr.f32.gmra.mxu0 %v602
    %v833 = vpop.f32.mrf.mxu0
    %v834 = vadd.f32 %v520, %v833
    %v835 = vpop.f32.mrf.mxu0
    %836 = vmatprep.mubr.f32.mxu0 0.0
    %837 = vmatmul.mubr.f32.gmra.mxu0 %v605
    %v838 = vpop.f32.mrf.mxu0
    %v839 = vadd.f32 %v520, %v838
    %v840 = vpop.f32.mrf.mxu0
    %841 = vmatprep.mubr.f32.mxu0 0.0
    %842 = vmatmul.mubr.f32.gmra.mxu0 %v608
    %v843 = vpop.f32.mrf.mxu0
    %v844 = vadd.f32 %v520, %v843
    %v845 = vpop.f32.mrf.mxu0
    %846 = vmatprep.mubr.f32.mxu0 0.0
    %847 = vmatmul.mubr.f32.gmra.mxu0 %v611
    %v848 = vpop.f32.mrf.mxu0
    %v849 = vadd.f32 %v520, %v848
    %v850 = vpop.f32.mrf.mxu0
    %851 = vmatprep.mubr.f32.mxu0 0.0
    %852 = vmatmul.mubr.f32.gmra.mxu0 %v614
    %v853 = vpop.f32.mrf.mxu0
    %v854 = vadd.f32 %v520, %v853
    %v855 = vpop.f32.mrf.mxu0
    %856 = vmatprep.mubr.f32.mxu0 0.0
    %857 = vmatmul.mubr.f32.gmra.mxu0 %v617
    %v858 = vpop.f32.mrf.mxu0
    %v859 = vadd.f32 %v520, %v858
    %v860 = vpop.f32.mrf.mxu0
    %861 = vmatprep.mubr.f32.mxu0 0.0
    %862 = vmatmul.mubr.f32.gmra.mxu0 %v620
    %v863 = vpop.f32.mrf.mxu0
    %v864 = vadd.f32 %v520, %v863
    %v865 = vpop.f32.mrf.mxu0
    %866 = vmatprep.mubr.f32.mxu0 0.0
    %867 = vmatmul.mubr.f32.gmra.mxu0 %v623
    %v868 = vpop.f32.mrf.mxu0
    %v869 = vadd.f32 %v520, %v868
    %v870 = vpop.f32.mrf.mxu0
    %871 = vmatprep.mubr.f32.mxu0 0.0
    %872 = vmatmul.mubr.f32.gmra.mxu0 %v626
    %v873 = vpop.f32.mrf.mxu0
    %v874 = vadd.f32 %v520, %v873
    %v875 = vpop.f32.mrf.mxu0
    %876 = vmatprep.mubr.f32.mxu0 0.0
    %877 = vmatmul.mubr.f32.gmra.mxu0 %v629
    %v878 = vpop.f32.mrf.mxu0
    %v879 = vadd.f32 %v520, %v878
    %v880 = vpop.f32.mrf.mxu0
    %881 = vmatprep.mubr.f32.mxu0 0.0
    %882 = vmatmul.mubr.f32.gmra.mxu0 %v632
    %v883 = vpop.f32.mrf.mxu0
    %v884 = vadd.f32 %v520, %v883
    %v885 = vpop.f32.mrf.mxu0
    %886 = vmatprep.mubr.f32.mxu0 0.0
    %887 = vmatmul.mubr.f32.gmra.mxu0 %v635
    %v888 = vpop.f32.mrf.mxu0
    %v889 = vadd.f32 %v520, %v888
    %v890 = vpop.f32.mrf.mxu0
    %891 = vdwg.mxu0
    %v892 = vmax.f32 %v704, 0.0
    %v893 = vmax.f32 %v709, 0.0
    %v894 = vmax.f32 %v714, 0.0
    %v895 = vmax.f32 %v719, 0.0
    %v896 = vmax.f32 %v724, 0.0
    %v897 = vmax.f32 %v729, 0.0
    %v898 = vmax.f32 %v734, 0.0
    %v899 = vmax.f32 %v739, 0.0
    %v900 = vmax.f32 %v744, 0.0
    %v901 = vmax.f32 %v749, 0.0
    %v902 = vmax.f32 %v754, 0.0
    %v903 = vmax.f32 %v759, 0.0
    %v904 = vmax.f32 %v764, 0.0
    %v905 = vmax.f32 %v769, 0.0
    %v906 = vmax.f32 %v774, 0.0
    %v907 = vmax.f32 %v779, 0.0
    %v908 = vmax.f32 %v784, 0.0
    %v909 = vmax.f32 %v789, 0.0
    %v910 = vmax.f32 %v794, 0.0
    %v911 = vmax.f32 %v799, 0.0
    %v912 = vmax.f32 %v804, 0.0
    %v913 = vmax.f32 %v809, 0.0
    %v914 = vmax.f32 %v814, 0.0
    %v915 = vmax.f32 %v819, 0.0
    %v916 = vmax.f32 %v824, 0.0
    %v917 = vmax.f32 %v829, 0.0
    %v918 = vmax.f32 %v834, 0.0
    %v919 = vmax.f32 %v839, 0.0
    %v920 = vmax.f32 %v844, 0.0
    %v921 = vmax.f32 %v849, 0.0
    %v922 = vmax.f32 %v854, 0.0
    %v923 = vmax.f32 %v859, 0.0
    %v924 = vmax.f32 %v864, 0.0
    %v925 = vmax.f32 %v869, 0.0
    %v926 = vmax.f32 %v874, 0.0
    %v927 = vmax.f32 %v879, 0.0
    %v928 = vmax.f32 %v884, 0.0
    %v929 = vmax.f32 %v889, 0.0
    %v930 = vld [vmem:[%s5] sm:$0xff]
    %v931 = vld [vmem:[%s5 + $0x8] sm:$0xff]
    %v932 = vld [vmem:[%s5 + $0x10] sm:$0xff]
    %v933 = vld [vmem:[%s5 + $0x18] sm:$0xff]
    %v934 = vld [vmem:[%s5 + $0x20] sm:$0xff]
    %v935 = vld [vmem:[%s5 + $0x28] sm:$0xff]
    %v936 = vld [vmem:[%s5 + $0x30] sm:$0xff]
    %v937 = vld [vmem:[%s5 + $0x38] sm:$0xff]
    %v938 = vld [vmem:[%s6] sm:$0x1]
    %v940 = vlaneseq
    %v941 = vshrl.u32 %v940, 7
    %v942 = vsub.s32 0, %v941
    %v943 = vrot.slane %v938, %v942
    %vm945 = vcmask 523264
    %v947 = vsel %vm945, %v892, 0
    %v950 = vsel %vm945, %v893, 0
    %v953 = vsel %vm945, %v894, 0
    %v956 = vsel %vm945, %v895, 0
    %v959 = vsel %vm945, %v896, 0
    %v962 = vsel %vm945, %v897, 0
    %v965 = vsel %vm945, %v898, 0
    %v968 = vsel %vm945, %v899, 0
    %v971 = vsel %vm945, %v900, 0
    %v974 = vsel %vm945, %v901, 0
    %v977 = vsel %vm945, %v902, 0
    %v980 = vsel %vm945, %v903, 0
    %v983 = vsel %vm945, %v904, 0
    %v986 = vsel %vm945, %v905, 0
    %v989 = vsel %vm945, %v906, 0
    %v992 = vsel %vm945, %v907, 0
    %v995 = vsel %vm945, %v908, 0
    %v998 = vsel %vm945, %v909, 0
    %v1001 = vsel %vm945, %v910, 0
    %v1004 = vsel %vm945, %v911, 0
    %v1007 = vsel %vm945, %v912, 0
    %v1010 = vsel %vm945, %v913, 0
    %v1013 = vsel %vm945, %v914, 0
    %v1016 = vsel %vm945, %v915, 0
    %v1019 = vsel %vm945, %v916, 0
    %v1022 = vsel %vm945, %v917, 0
    %v1025 = vsel %vm945, %v918, 0
    %v1028 = vsel %vm945, %v919, 0
    %v1031 = vsel %vm945, %v920, 0
    %v1034 = vsel %vm945, %v921, 0
    %v1037 = vsel %vm945, %v922, 0
    %v1040 = vsel %vm945, %v923, 0
    %v1043 = vsel %vm945, %v924, 0
    %v1046 = vsel %vm945, %v925, 0
    %v1049 = vsel %vm945, %v926, 0
    %v1052 = vsel %vm945, %v927, 0
    %v1055 = vsel %vm945, %v928, 0
    %v1058 = vsel %vm945, %v929, 0
    %1060 = vmatprep.subr.mxu0 0.0
    %1061 = vmatpush1.msra.mxu0 0.0
    %1062 = vmatprep.subr.mxu0 0.0
    %1063 = vmatpush1.msra.mxu0 0.0
    %1064 = vmatprep.subr.mxu0 0.0
    %1065 = vmatpush1.msra.mxu0 0.0
    %1066 = vmatprep.subr.mxu0 0.0
    %1067 = vmatpush1.msra.mxu0 0.0
    %1068 = vmatprep.subr.mxu0 0.0
    %1069 = vmatpush1.msra.mxu0 0.0
    %1070 = vmatprep.subr.mxu0 0.0
    %1071 = vmatpush1.msra.mxu0 0.0
    %1072 = vmatprep.subr.mxu0 0.0
    %1073 = vmatpush1.msra.mxu0 0.0
    %1074 = vmatprep.subr.mxu0 0.0
    %1075 = vmatpush1.msra.mxu0 0.0
    %1076 = vmatprep.subr.mxu0 0.0
    %1077 = vmatpush1.msra.mxu0 %v937
    %1078 = vmatprep.subr.mxu0 0.0
    %1079 = vmatpush1.msra.mxu0 %v936
    %1080 = vmatprep.subr.mxu0 0.0
    %1081 = vmatpush1.msra.mxu0 %v935
    %1082 = vmatprep.subr.mxu0 0.0
    %1083 = vmatpush1.msra.mxu0 %v934
    %1084 = vmatprep.subr.mxu0 0.0
    %1085 = vmatpush1.msra.mxu0 %v933
    %1086 = vmatprep.subr.mxu0 0.0
    %1087 = vmatpush1.msra.mxu0 %v932
    %1088 = vmatprep.subr.mxu0 0.0
    %1089 = vmatpush1.msra.mxu0 %v931
    %1090 = vmatprep.subr.mxu0 0.0
    %1091 = vmatpush1.msra.mxu0 %v930
    %1092 = vmatprep.subr.mxu0 0.0
    %1093 = vmatpush2.msra.mxu0 0.0
    %1094 = vmatprep.subr.mxu0 0.0
    %1095 = vmatpush2.msra.mxu0 0.0
    %1096 = vmatprep.subr.mxu0 0.0
    %1097 = vmatpush2.msra.mxu0 0.0
    %1098 = vmatprep.subr.mxu0 0.0
    %1099 = vmatpush2.msra.mxu0 0.0
    %1100 = vmatprep.subr.mxu0 0.0
    %1101 = vmatpush2.msra.mxu0 0.0
    %1102 = vmatprep.subr.mxu0 0.0
    %1103 = vmatpush2.msra.mxu0 0.0
    %1104 = vmatprep.subr.mxu0 0.0
    %1105 = vmatpush2.msra.mxu0 0.0
    %1106 = vmatprep.subr.mxu0 0.0
    %1107 = vmatpush2.msra.mxu0 0.0
    %1108 = vmatprep.subr.mxu0 0.0
    %1109 = vmatpush2.msra.mxu0 0.0
    %1110 = vmatprep.subr.mxu0 0.0
    %1111 = vmatpush2.msra.mxu0 0.0
    %1112 = vmatprep.subr.mxu0 0.0
    %1113 = vmatpush2.msra.mxu0 0.0
    %1114 = vmatprep.subr.mxu0 0.0
    %1115 = vmatpush2.msra.mxu0 0.0
    %1116 = vmatprep.subr.mxu0 0.0
    %1117 = vmatpush2.msra.mxu0 0.0
    %1118 = vmatprep.subr.mxu0 0.0
    %1119 = vmatpush2.msra.mxu0 0.0
    %1120 = vmatprep.subr.mxu0 0.0
    %1121 = vmatpush2.msra.mxu0 0.0
    %1122 = vmatprep.subr.mxu0 0.0
    %1123 = vmatpush2.msra.mxu0 0.0
    %1124 = vmatprep.mubr.f32.mxu0 0.0
    %1125 = vmatmul.mubr.f32.gmra.mxu0 %v947
    %v1126 = vpop.f32.mrf.mxu0
    %v1127 = vadd.f32 %v943, %v1126
    %v1128 = vpop.f32.mrf.mxu0
    %1129 = vmatprep.mubr.f32.mxu0 0.0
    %1130 = vmatmul.mubr.f32.gmra.mxu0 %v950
    %v1131 = vpop.f32.mrf.mxu0
    %v1132 = vadd.f32 %v943, %v1131
    %v1133 = vpop.f32.mrf.mxu0
    %1134 = vmatprep.mubr.f32.mxu0 0.0
    %1135 = vmatmul.mubr.f32.gmra.mxu0 %v953
    %v1136 = vpop.f32.mrf.mxu0
    %v1137 = vadd.f32 %v943, %v1136
    %v1138 = vpop.f32.mrf.mxu0
    %1139 = vmatprep.mubr.f32.mxu0 0.0
    %1140 = vmatmul.mubr.f32.gmra.mxu0 %v956
    %v1141 = vpop.f32.mrf.mxu0
    %v1142 = vadd.f32 %v943, %v1141
    %v1143 = vpop.f32.mrf.mxu0
    %1144 = vmatprep.mubr.f32.mxu0 0.0
    %1145 = vmatmul.mubr.f32.gmra.mxu0 %v959
    %v1146 = vpop.f32.mrf.mxu0
    %v1147 = vadd.f32 %v943, %v1146
    %v1148 = vpop.f32.mrf.mxu0
    %1149 = vmatprep.mubr.f32.mxu0 0.0
    %1150 = vmatmul.mubr.f32.gmra.mxu0 %v962
    %v1151 = vpop.f32.mrf.mxu0
    %v1152 = vadd.f32 %v943, %v1151
    %v1153 = vpop.f32.mrf.mxu0
    %1154 = vmatprep.mubr.f32.mxu0 0.0
    %1155 = vmatmul.mubr.f32.gmra.mxu0 %v965
    %v1156 = vpop.f32.mrf.mxu0
    %v1157 = vadd.f32 %v943, %v1156
    %v1158 = vpop.f32.mrf.mxu0
    %1159 = vmatprep.mubr.f32.mxu0 0.0
    %1160 = vmatmul.mubr.f32.gmra.mxu0 %v968
    %v1161 = vpop.f32.mrf.mxu0
    %v1162 = vadd.f32 %v943, %v1161
    %v1163 = vpop.f32.mrf.mxu0
    %1164 = vmatprep.mubr.f32.mxu0 0.0
    %1165 = vmatmul.mubr.f32.gmra.mxu0 %v971
    %v1166 = vpop.f32.mrf.mxu0
    %v1167 = vadd.f32 %v943, %v1166
    %v1168 = vpop.f32.mrf.mxu0
    %1169 = vmatprep.mubr.f32.mxu0 0.0
    %1170 = vmatmul.mubr.f32.gmra.mxu0 %v974
    %v1171 = vpop.f32.mrf.mxu0
    %v1172 = vadd.f32 %v943, %v1171
    %v1173 = vpop.f32.mrf.mxu0
    %1174 = vmatprep.mubr.f32.mxu0 0.0
    %1175 = vmatmul.mubr.f32.gmra.mxu0 %v977
    %v1176 = vpop.f32.mrf.mxu0
    %v1177 = vadd.f32 %v943, %v1176
    %v1178 = vpop.f32.mrf.mxu0
    %1179 = vmatprep.mubr.f32.mxu0 0.0
    %1180 = vmatmul.mubr.f32.gmra.mxu0 %v980
    %v1181 = vpop.f32.mrf.mxu0
    %v1182 = vadd.f32 %v943, %v1181
    %v1183 = vpop.f32.mrf.mxu0
    %1184 = vmatprep.mubr.f32.mxu0 0.0
    %1185 = vmatmul.mubr.f32.gmra.mxu0 %v983
    %v1186 = vpop.f32.mrf.mxu0
    %v1187 = vadd.f32 %v943, %v1186
    %v1188 = vpop.f32.mrf.mxu0
    %1189 = vmatprep.mubr.f32.mxu0 0.0
    %1190 = vmatmul.mubr.f32.gmra.mxu0 %v986
    %v1191 = vpop.f32.mrf.mxu0
    %v1192 = vadd.f32 %v943, %v1191
    %v1193 = vpop.f32.mrf.mxu0
    %1194 = vmatprep.mubr.f32.mxu0 0.0
    %1195 = vmatmul.mubr.f32.gmra.mxu0 %v989
    %v1196 = vpop.f32.mrf.mxu0
    %v1197 = vadd.f32 %v943, %v1196
    %v1198 = vpop.f32.mrf.mxu0
    %1199 = vmatprep.mubr.f32.mxu0 0.0
    %1200 = vmatmul.mubr.f32.gmra.mxu0 %v992
    %v1201 = vpop.f32.mrf.mxu0
    %v1202 = vadd.f32 %v943, %v1201
    %v1203 = vpop.f32.mrf.mxu0
    %1204 = vmatprep.mubr.f32.mxu0 0.0
    %1205 = vmatmul.mubr.f32.gmra.mxu0 %v995
    %v1206 = vpop.f32.mrf.mxu0
    %v1207 = vadd.f32 %v943, %v1206
    %v1208 = vpop.f32.mrf.mxu0
    %1209 = vmatprep.mubr.f32.mxu0 0.0
    %1210 = vmatmul.mubr.f32.gmra.mxu0 %v998
    %v1211 = vpop.f32.mrf.mxu0
    %v1212 = vadd.f32 %v943, %v1211
    %v1213 = vpop.f32.mrf.mxu0
    %1214 = vmatprep.mubr.f32.mxu0 0.0
    %1215 = vmatmul.mubr.f32.gmra.mxu0 %v1001
    %v1216 = vpop.f32.mrf.mxu0
    %v1217 = vadd.f32 %v943, %v1216
    %v1218 = vpop.f32.mrf.mxu0
    %1219 = vmatprep.mubr.f32.mxu0 0.0
    %1220 = vmatmul.mubr.f32.gmra.mxu0 %v1004
    %v1221 = vpop.f32.mrf.mxu0
    %v1222 = vadd.f32 %v943, %v1221
    %v1223 = vpop.f32.mrf.mxu0
    %1224 = vmatprep.mubr.f32.mxu0 0.0
    %1225 = vmatmul.mubr.f32.gmra.mxu0 %v1007
    %v1226 = vpop.f32.mrf.mxu0
    %v1227 = vadd.f32 %v943, %v1226
    %v1228 = vpop.f32.mrf.mxu0
    %1229 = vmatprep.mubr.f32.mxu0 0.0
    %1230 = vmatmul.mubr.f32.gmra.mxu0 %v1010
    %v1231 = vpop.f32.mrf.mxu0
    %v1232 = vadd.f32 %v943, %v1231
    %v1233 = vpop.f32.mrf.mxu0
    %1234 = vmatprep.mubr.f32.mxu0 0.0
    %1235 = vmatmul.mubr.f32.gmra.mxu0 %v1013
    %v1236 = vpop.f32.mrf.mxu0
    %v1237 = vadd.f32 %v943, %v1236
    %v1238 = vpop.f32.mrf.mxu0
    %1239 = vmatprep.mubr.f32.mxu0 0.0
    %1240 = vmatmul.mubr.f32.gmra.mxu0 %v1016
    %v1241 = vpop.f32.mrf.mxu0
    %v1242 = vadd.f32 %v943, %v1241
    %v1243 = vpop.f32.mrf.mxu0
    %1244 = vmatprep.mubr.f32.mxu0 0.0
    %1245 = vmatmul.mubr.f32.gmra.mxu0 %v1019
    %v1246 = vpop.f32.mrf.mxu0
    %v1247 = vadd.f32 %v943, %v1246
    %v1248 = vpop.f32.mrf.mxu0
    %1249 = vmatprep.mubr.f32.mxu0 0.0
    %1250 = vmatmul.mubr.f32.gmra.mxu0 %v1022
    %v1251 = vpop.f32.mrf.mxu0
    %v1252 = vadd.f32 %v943, %v1251
    %v1253 = vpop.f32.mrf.mxu0
    %1254 = vmatprep.mubr.f32.mxu0 0.0
    %1255 = vmatmul.mubr.f32.gmra.mxu0 %v1025
    %v1256 = vpop.f32.mrf.mxu0
    %v1257 = vadd.f32 %v943, %v1256
    %v1258 = vpop.f32.mrf.mxu0
    %1259 = vmatprep.mubr.f32.mxu0 0.0
    %1260 = vmatmul.mubr.f32.gmra.mxu0 %v1028
    %v1261 = vpop.f32.mrf.mxu0
    %v1262 = vadd.f32 %v943, %v1261
    %v1263 = vpop.f32.mrf.mxu0
    %1264 = vmatprep.mubr.f32.mxu0 0.0
    %1265 = vmatmul.mubr.f32.gmra.mxu0 %v1031
    %v1266 = vpop.f32.mrf.mxu0
    %v1267 = vadd.f32 %v943, %v1266
    %v1268 = vpop.f32.mrf.mxu0
    %1269 = vmatprep.mubr.f32.mxu0 0.0
    %1270 = vmatmul.mubr.f32.gmra.mxu0 %v1034
    %v1271 = vpop.f32.mrf.mxu0
    %v1272 = vadd.f32 %v943, %v1271
    %v1273 = vpop.f32.mrf.mxu0
    %1274 = vmatprep.mubr.f32.mxu0 0.0
    %1275 = vmatmul.mubr.f32.gmra.mxu0 %v1037
    %v1276 = vpop.f32.mrf.mxu0
    %v1277 = vadd.f32 %v943, %v1276
    %v1278 = vpop.f32.mrf.mxu0
    %1279 = vmatprep.mubr.f32.mxu0 0.0
    %1280 = vmatmul.mubr.f32.gmra.mxu0 %v1040
    %v1281 = vpop.f32.mrf.mxu0
    %v1282 = vadd.f32 %v943, %v1281
    %v1283 = vpop.f32.mrf.mxu0
    %1284 = vmatprep.mubr.f32.mxu0 0.0
    %1285 = vmatmul.mubr.f32.gmra.mxu0 %v1043
    %v1286 = vpop.f32.mrf.mxu0
    %v1287 = vadd.f32 %v943, %v1286
    %v1288 = vpop.f32.mrf.mxu0
    %1289 = vmatprep.mubr.f32.mxu0 0.0
    %1290 = vmatmul.mubr.f32.gmra.mxu0 %v1046
    %v1291 = vpop.f32.mrf.mxu0
    %v1292 = vadd.f32 %v943, %v1291
    %v1293 = vpop.f32.mrf.mxu0
    %1294 = vmatprep.mubr.f32.mxu0 0.0
    %1295 = vmatmul.mubr.f32.gmra.mxu0 %v1049
    %v1296 = vpop.f32.mrf.mxu0
    %v1297 = vadd.f32 %v943, %v1296
    %v1298 = vpop.f32.mrf.mxu0
    %1299 = vmatprep.mubr.f32.mxu0 0.0
    %1300 = vmatmul.mubr.f32.gmra.mxu0 %v1052
    %v1301 = vpop.f32.mrf.mxu0
    %v1302 = vadd.f32 %v943, %v1301
    %v1303 = vpop.f32.mrf.mxu0
    %1304 = vmatprep.mubr.f32.mxu0 0.0
    %1305 = vmatmul.mubr.f32.gmra.mxu0 %v1055
    %v1306 = vpop.f32.mrf.mxu0
    %v1307 = vadd.f32 %v943, %v1306
    %v1308 = vpop.f32.mrf.mxu0
    %1309 = vmatprep.mubr.f32.mxu0 0.0
    %1310 = vmatmul.mubr.f32.gmra.mxu0 %v1058
    %v1311 = vpop.f32.mrf.mxu0
    %v1312 = vadd.f32 %v943, %v1311
    %v1313 = vpop.f32.mrf.mxu0
    %1314 = vdwg.mxu0
    %v1315 = vmax.f32 %v1127, 0.0
    %v1316 = vmax.f32 %v1132, 0.0
    %v1317 = vmax.f32 %v1137, 0.0
    %v1318 = vmax.f32 %v1142, 0.0
    %v1319 = vmax.f32 %v1147, 0.0
    %v1320 = vmax.f32 %v1152, 0.0
    %v1321 = vmax.f32 %v1157, 0.0
    %v1322 = vmax.f32 %v1162, 0.0
    %v1323 = vmax.f32 %v1167, 0.0
    %v1324 = vmax.f32 %v1172, 0.0
    %v1325 = vmax.f32 %v1177, 0.0
    %v1326 = vmax.f32 %v1182, 0.0
    %v1327 = vmax.f32 %v1187, 0.0
    %v1328 = vmax.f32 %v1192, 0.0
    %v1329 = vmax.f32 %v1197, 0.0
    %v1330 = vmax.f32 %v1202, 0.0
    %v1331 = vmax.f32 %v1207, 0.0
    %v1332 = vmax.f32 %v1212, 0.0
    %v1333 = vmax.f32 %v1217, 0.0
    %v1334 = vmax.f32 %v1222, 0.0
    %v1335 = vmax.f32 %v1227, 0.0
    %v1336 = vmax.f32 %v1232, 0.0
    %v1337 = vmax.f32 %v1237, 0.0
    %v1338 = vmax.f32 %v1242, 0.0
    %v1339 = vmax.f32 %v1247, 0.0
    %v1340 = vmax.f32 %v1252, 0.0
    %v1341 = vmax.f32 %v1257, 0.0
    %v1342 = vmax.f32 %v1262, 0.0
    %v1343 = vmax.f32 %v1267, 0.0
    %v1344 = vmax.f32 %v1272, 0.0
    %v1345 = vmax.f32 %v1277, 0.0
    %v1346 = vmax.f32 %v1282, 0.0
    %v1347 = vmax.f32 %v1287, 0.0
    %v1348 = vmax.f32 %v1292, 0.0
    %v1349 = vmax.f32 %v1297, 0.0
    %v1350 = vmax.f32 %v1302, 0.0
    %v1351 = vmax.f32 %v1307, 0.0
    %v1352 = vmax.f32 %v1312, 0.0
    %v1353 = vld [vmem:[%s7] sm:$0xff]
    %v1354 = vld [vmem:[%s7 + $0x8] sm:$0xff]
    %v1355 = vld [vmem:[%s7 + $0x10] sm:$0xff]
    %v1356 = vld [vmem:[%s7 + $0x18] sm:$0xff]
    %v1357 = vld [vmem:[%s7 + $0x20] sm:$0xff]
    %v1358 = vld [vmem:[%s7 + $0x28] sm:$0xff]
    %v1359 = vld [vmem:[%s7 + $0x30] sm:$0xff]
    %v1360 = vld [vmem:[%s7 + $0x38] sm:$0xff]
    %v1361 = vld [vmem:[%s7 + $0x40] sm:$0xff]
    %v1362 = vld [vmem:[%s7 + $0x48] sm:$0xff]
    %v1363 = vld [vmem:[%s7 + $0x50] sm:$0xff]
    %v1364 = vld [vmem:[%s7 + $0x58] sm:$0xff]
    %v1365 = vld [vmem:[%s7 + $0x60] sm:$0xff]
    %v1366 = vld [vmem:[%s7 + $0x68] sm:$0xff]
    %v1367 = vld [vmem:[%s7 + $0x70] sm:$0xff]
    %v1368 = vld [vmem:[%s7 + $0x78] sm:$0xff]
    %v1369 = vld [vmem:[%s7 + $0x80] sm:$0xff]
    %v1370 = vld [vmem:[%s7 + $0x88] sm:$0xff]
    %v1371 = vld [vmem:[%s7 + $0x90] sm:$0xff]
    %v1372 = vld [vmem:[%s7 + $0x98] sm:$0xff]
    %v1373 = vld [vmem:[%s7 + $0xa0] sm:$0xff]
    %v1374 = vld [vmem:[%s7 + $0xa8] sm:$0xff]
    %v1375 = vld [vmem:[%s7 + $0xb0] sm:$0xff]
    %v1376 = vld [vmem:[%s7 + $0xb8] sm:$0xff]
    %v1377 = vld [vmem:[%s7 + $0xc0] sm:$0xff]
    %v1378 = vld [vmem:[%s7 + $0xc8] sm:$0xff]
    %v1379 = vld [vmem:[%s7 + $0xd0] sm:$0xff]
    %v1380 = vld [vmem:[%s7 + $0xd8] sm:$0xff]
    %v1381 = vld [vmem:[%s7 + $0xe0] sm:$0xff]
    %v1382 = vld [vmem:[%s7 + $0xe8] sm:$0xff]
    %v1383 = vld [vmem:[%s7 + $0xf0] sm:$0xff]
    %v1384 = vld [vmem:[%s7 + $0xf8] sm:$0xff]
    %v1385 = vld [vmem:[%s8] sm:$0x3]
    %v1387 = vlaneseq
    %v1388 = vshrl.u32 %v1387, 7
    %v1389 = vsub.s32 0, %v1388
    %v1390 = vrot.slane %v1385, %v1389
    %v1391 = vlaneseq
    %v1392 = vshrl.u32 %v1391, 7
    %v1393 = vsub.s32 1, %v1392
    %v1394 = vrot.slane %v1385, %v1393
    %1397 = vmatprep.subr.mxu0 %v1384
    %1398 = vmatpush1.msra.mxu0 %v1383
    %1399 = vmatprep.subr.mxu0 %v1382
    %1400 = vmatpush1.msra.mxu0 %v1381
    %1401 = vmatprep.subr.mxu0 %v1380
    %1402 = vmatpush1.msra.mxu0 %v1379
    %1403 = vmatprep.subr.mxu0 %v1378
    %1404 = vmatpush1.msra.mxu0 %v1377
    %1405 = vmatprep.subr.mxu0 %v1376
    %1406 = vmatpush1.msra.mxu0 %v1375
    %1407 = vmatprep.subr.mxu0 %v1374
    %1408 = vmatpush1.msra.mxu0 %v1373
    %1409 = vmatprep.subr.mxu0 %v1372
    %1410 = vmatpush1.msra.mxu0 %v1371
    %1411 = vmatprep.subr.mxu0 %v1370
    %1412 = vmatpush1.msra.mxu0 %v1369
    %1413 = vmatprep.subr.mxu0 %v1368
    %1414 = vmatpush1.msra.mxu0 %v1367
    %1415 = vmatprep.subr.mxu0 %v1366
    %1416 = vmatpush1.msra.mxu0 %v1365
    %1417 = vmatprep.subr.mxu0 %v1364
    %1418 = vmatpush1.msra.mxu0 %v1363
    %1419 = vmatprep.subr.mxu0 %v1362
    %1420 = vmatpush1.msra.mxu0 %v1361
    %1421 = vmatprep.subr.mxu0 %v1360
    %1422 = vmatpush1.msra.mxu0 %v1359
    %1423 = vmatprep.subr.mxu0 %v1358
    %1424 = vmatpush1.msra.mxu0 %v1357
    %1425 = vmatprep.subr.mxu0 %v1356
    %1426 = vmatpush1.msra.mxu0 %v1355
    %1427 = vmatprep.subr.mxu0 %v1354
    %1428 = vmatpush1.msra.mxu0 %v1353
    %1429 = vmatprep.subr.mxu0 0.0
    %1430 = vmatpush2.msra.mxu0 0.0
    %1431 = vmatprep.subr.mxu0 0.0
    %1432 = vmatpush2.msra.mxu0 0.0
    %1433 = vmatprep.subr.mxu0 0.0
    %1434 = vmatpush2.msra.mxu0 0.0
    %1435 = vmatprep.subr.mxu0 0.0
    %1436 = vmatpush2.msra.mxu0 0.0
    %1437 = vmatprep.subr.mxu0 0.0
    %1438 = vmatpush2.msra.mxu0 0.0
    %1439 = vmatprep.subr.mxu0 0.0
    %1440 = vmatpush2.msra.mxu0 0.0
    %1441 = vmatprep.subr.mxu0 0.0
    %1442 = vmatpush2.msra.mxu0 0.0
    %1443 = vmatprep.subr.mxu0 0.0
    %1444 = vmatpush2.msra.mxu0 0.0
    %1445 = vmatprep.subr.mxu0 0.0
    %1446 = vmatpush2.msra.mxu0 0.0
    %1447 = vmatprep.subr.mxu0 0.0
    %1448 = vmatpush2.msra.mxu0 0.0
    %1449 = vmatprep.subr.mxu0 0.0
    %1450 = vmatpush2.msra.mxu0 0.0
    %1451 = vmatprep.subr.mxu0 0.0
    %1452 = vmatpush2.msra.mxu0 0.0
    %1453 = vmatprep.subr.mxu0 0.0
    %1454 = vmatpush2.msra.mxu0 0.0
    %1455 = vmatprep.subr.mxu0 0.0
    %1456 = vmatpush2.msra.mxu0 0.0
    %1457 = vmatprep.subr.mxu0 0.0
    %1458 = vmatpush2.msra.mxu0 0.0
    %1459 = vmatprep.subr.mxu0 0.0
    %1460 = vmatpush2.msra.mxu0 0.0
    %1461 = vmatprep.mubr.f32.mxu0 0.0
    %1462 = vmatmul.mubr.f32.gmra.mxu0 %v1315
    %v1463 = vpop.f32.mrf.mxu0
    %v1464 = vadd.f32 %v1390, %v1463
    %v1465 = vpop.f32.mrf.mxu0
    %v1466 = vadd.f32 %v1394, %v1465
    %1467 = vmatprep.mubr.f32.mxu0 0.0
    %1468 = vmatmul.mubr.f32.gmra.mxu0 %v1316
    %v1469 = vpop.f32.mrf.mxu0
    %v1470 = vadd.f32 %v1390, %v1469
    %v1471 = vpop.f32.mrf.mxu0
    %v1472 = vadd.f32 %v1394, %v1471
    %1473 = vmatprep.mubr.f32.mxu0 0.0
    %1474 = vmatmul.mubr.f32.gmra.mxu0 %v1317
    %v1475 = vpop.f32.mrf.mxu0
    %v1476 = vadd.f32 %v1390, %v1475
    %v1477 = vpop.f32.mrf.mxu0
    %v1478 = vadd.f32 %v1394, %v1477
    %1479 = vmatprep.mubr.f32.mxu0 0.0
    %1480 = vmatmul.mubr.f32.gmra.mxu0 %v1318
    %v1481 = vpop.f32.mrf.mxu0
    %v1482 = vadd.f32 %v1390, %v1481
    %v1483 = vpop.f32.mrf.mxu0
    %v1484 = vadd.f32 %v1394, %v1483
    %1485 = vmatprep.mubr.f32.mxu0 0.0
    %1486 = vmatmul.mubr.f32.gmra.mxu0 %v1319
    %v1487 = vpop.f32.mrf.mxu0
    %v1488 = vadd.f32 %v1390, %v1487
    %v1489 = vpop.f32.mrf.mxu0
    %v1490 = vadd.f32 %v1394, %v1489
    %1491 = vmatprep.mubr.f32.mxu0 0.0
    %1492 = vmatmul.mubr.f32.gmra.mxu0 %v1320
    %v1493 = vpop.f32.mrf.mxu0
    %v1494 = vadd.f32 %v1390, %v1493
    %v1495 = vpop.f32.mrf.mxu0
    %v1496 = vadd.f32 %v1394, %v1495
    %1497 = vmatprep.mubr.f32.mxu0 0.0
    %1498 = vmatmul.mubr.f32.gmra.mxu0 %v1321
    %v1499 = vpop.f32.mrf.mxu0
    %v1500 = vadd.f32 %v1390, %v1499
    %v1501 = vpop.f32.mrf.mxu0
    %v1502 = vadd.f32 %v1394, %v1501
    %1503 = vmatprep.mubr.f32.mxu0 0.0
    %1504 = vmatmul.mubr.f32.gmra.mxu0 %v1322
    %v1505 = vpop.f32.mrf.mxu0
    %v1506 = vadd.f32 %v1390, %v1505
    %v1507 = vpop.f32.mrf.mxu0
    %v1508 = vadd.f32 %v1394, %v1507
    %1509 = vmatprep.mubr.f32.mxu0 0.0
    %1510 = vmatmul.mubr.f32.gmra.mxu0 %v1323
    %v1511 = vpop.f32.mrf.mxu0
    %v1512 = vadd.f32 %v1390, %v1511
    %v1513 = vpop.f32.mrf.mxu0
    %v1514 = vadd.f32 %v1394, %v1513
    %1515 = vmatprep.mubr.f32.mxu0 0.0
    %1516 = vmatmul.mubr.f32.gmra.mxu0 %v1324
    %v1517 = vpop.f32.mrf.mxu0
    %v1518 = vadd.f32 %v1390, %v1517
    %v1519 = vpop.f32.mrf.mxu0
    %v1520 = vadd.f32 %v1394, %v1519
    %1521 = vmatprep.mubr.f32.mxu0 0.0
    %1522 = vmatmul.mubr.f32.gmra.mxu0 %v1325
    %v1523 = vpop.f32.mrf.mxu0
    %v1524 = vadd.f32 %v1390, %v1523
    %v1525 = vpop.f32.mrf.mxu0
    %v1526 = vadd.f32 %v1394, %v1525
    %1527 = vmatprep.mubr.f32.mxu0 0.0
    %1528 = vmatmul.mubr.f32.gmra.mxu0 %v1326
    %v1529 = vpop.f32.mrf.mxu0
    %v1530 = vadd.f32 %v1390, %v1529
    %v1531 = vpop.f32.mrf.mxu0
    %v1532 = vadd.f32 %v1394, %v1531
    %1533 = vmatprep.mubr.f32.mxu0 0.0
    %1534 = vmatmul.mubr.f32.gmra.mxu0 %v1327
    %v1535 = vpop.f32.mrf.mxu0
    %v1536 = vadd.f32 %v1390, %v1535
    %v1537 = vpop.f32.mrf.mxu0
    %v1538 = vadd.f32 %v1394, %v1537
    %1539 = vmatprep.mubr.f32.mxu0 0.0
    %1540 = vmatmul.mubr.f32.gmra.mxu0 %v1328
    %v1541 = vpop.f32.mrf.mxu0
    %v1542 = vadd.f32 %v1390, %v1541
    %v1543 = vpop.f32.mrf.mxu0
    %v1544 = vadd.f32 %v1394, %v1543
    %1545 = vmatprep.mubr.f32.mxu0 0.0
    %1546 = vmatmul.mubr.f32.gmra.mxu0 %v1329
    %v1547 = vpop.f32.mrf.mxu0
    %v1548 = vadd.f32 %v1390, %v1547
    %v1549 = vpop.f32.mrf.mxu0
    %v1550 = vadd.f32 %v1394, %v1549
    %1551 = vmatprep.mubr.f32.mxu0 0.0
    %1552 = vmatmul.mubr.f32.gmra.mxu0 %v1330
    %v1553 = vpop.f32.mrf.mxu0
    %v1554 = vadd.f32 %v1390, %v1553
    %v1555 = vpop.f32.mrf.mxu0
    %v1556 = vadd.f32 %v1394, %v1555
    %1557 = vmatprep.mubr.f32.mxu0 0.0
    %1558 = vmatmul.mubr.f32.gmra.mxu0 %v1331
    %v1559 = vpop.f32.mrf.mxu0
    %v1560 = vadd.f32 %v1390, %v1559
    %v1561 = vpop.f32.mrf.mxu0
    %v1562 = vadd.f32 %v1394, %v1561
    %1563 = vmatprep.mubr.f32.mxu0 0.0
    %1564 = vmatmul.mubr.f32.gmra.mxu0 %v1332
    %v1565 = vpop.f32.mrf.mxu0
    %v1566 = vadd.f32 %v1390, %v1565
    %v1567 = vpop.f32.mrf.mxu0
    %v1568 = vadd.f32 %v1394, %v1567
    %1569 = vmatprep.mubr.f32.mxu0 0.0
    %1570 = vmatmul.mubr.f32.gmra.mxu0 %v1333
    %v1571 = vpop.f32.mrf.mxu0
    %v1572 = vadd.f32 %v1390, %v1571
    %v1573 = vpop.f32.mrf.mxu0
    %v1574 = vadd.f32 %v1394, %v1573
    %1575 = vmatprep.mubr.f32.mxu0 0.0
    %1576 = vmatmul.mubr.f32.gmra.mxu0 %v1334
    %v1577 = vpop.f32.mrf.mxu0
    %v1578 = vadd.f32 %v1390, %v1577
    %v1579 = vpop.f32.mrf.mxu0
    %v1580 = vadd.f32 %v1394, %v1579
    %1581 = vmatprep.mubr.f32.mxu0 0.0
    %1582 = vmatmul.mubr.f32.gmra.mxu0 %v1335
    %v1583 = vpop.f32.mrf.mxu0
    %v1584 = vadd.f32 %v1390, %v1583
    %v1585 = vpop.f32.mrf.mxu0
    %v1586 = vadd.f32 %v1394, %v1585
    %1587 = vmatprep.mubr.f32.mxu0 0.0
    %1588 = vmatmul.mubr.f32.gmra.mxu0 %v1336
    %v1589 = vpop.f32.mrf.mxu0
    %v1590 = vadd.f32 %v1390, %v1589
    %v1591 = vpop.f32.mrf.mxu0
    %v1592 = vadd.f32 %v1394, %v1591
    %1593 = vmatprep.mubr.f32.mxu0 0.0
    %1594 = vmatmul.mubr.f32.gmra.mxu0 %v1337
    %v1595 = vpop.f32.mrf.mxu0
    %v1596 = vadd.f32 %v1390, %v1595
    %v1597 = vpop.f32.mrf.mxu0
    %v1598 = vadd.f32 %v1394, %v1597
    %1599 = vmatprep.mubr.f32.mxu0 0.0
    %1600 = vmatmul.mubr.f32.gmra.mxu0 %v1338
    %v1601 = vpop.f32.mrf.mxu0
    %v1602 = vadd.f32 %v1390, %v1601
    %v1603 = vpop.f32.mrf.mxu0
    %v1604 = vadd.f32 %v1394, %v1603
    %1605 = vmatprep.mubr.f32.mxu0 0.0
    %1606 = vmatmul.mubr.f32.gmra.mxu0 %v1339
    %v1607 = vpop.f32.mrf.mxu0
    %v1608 = vadd.f32 %v1390, %v1607
    %v1609 = vpop.f32.mrf.mxu0
    %v1610 = vadd.f32 %v1394, %v1609
    %1611 = vmatprep.mubr.f32.mxu0 0.0
    %1612 = vmatmul.mubr.f32.gmra.mxu0 %v1340
    %v1613 = vpop.f32.mrf.mxu0
    %v1614 = vadd.f32 %v1390, %v1613
    %v1615 = vpop.f32.mrf.mxu0
    %v1616 = vadd.f32 %v1394, %v1615
    %1617 = vmatprep.mubr.f32.mxu0 0.0
    %1618 = vmatmul.mubr.f32.gmra.mxu0 %v1341
    %v1619 = vpop.f32.mrf.mxu0
    %v1620 = vadd.f32 %v1390, %v1619
    %v1621 = vpop.f32.mrf.mxu0
    %v1622 = vadd.f32 %v1394, %v1621
    %1623 = vmatprep.mubr.f32.mxu0 0.0
    %1624 = vmatmul.mubr.f32.gmra.mxu0 %v1342
    %v1625 = vpop.f32.mrf.mxu0
    %v1626 = vadd.f32 %v1390, %v1625
    %v1627 = vpop.f32.mrf.mxu0
    %v1628 = vadd.f32 %v1394, %v1627
    %1629 = vmatprep.mubr.f32.mxu0 0.0
    %1630 = vmatmul.mubr.f32.gmra.mxu0 %v1343
    %v1631 = vpop.f32.mrf.mxu0
    %v1632 = vadd.f32 %v1390, %v1631
    %v1633 = vpop.f32.mrf.mxu0
    %v1634 = vadd.f32 %v1394, %v1633
    %1635 = vmatprep.mubr.f32.mxu0 0.0
    %1636 = vmatmul.mubr.f32.gmra.mxu0 %v1344
    %v1637 = vpop.f32.mrf.mxu0
    %v1638 = vadd.f32 %v1390, %v1637
    %v1639 = vpop.f32.mrf.mxu0
    %v1640 = vadd.f32 %v1394, %v1639
    %1641 = vmatprep.mubr.f32.mxu0 0.0
    %1642 = vmatmul.mubr.f32.gmra.mxu0 %v1345
    %v1643 = vpop.f32.mrf.mxu0
    %v1644 = vadd.f32 %v1390, %v1643
    %v1645 = vpop.f32.mrf.mxu0
    %v1646 = vadd.f32 %v1394, %v1645
    %1647 = vmatprep.mubr.f32.mxu0 0.0
    %1648 = vmatmul.mubr.f32.gmra.mxu0 %v1346
    %v1649 = vpop.f32.mrf.mxu0
    %v1650 = vadd.f32 %v1390, %v1649
    %v1651 = vpop.f32.mrf.mxu0
    %v1652 = vadd.f32 %v1394, %v1651
    %1653 = vmatprep.mubr.f32.mxu0 0.0
    %1654 = vmatmul.mubr.f32.gmra.mxu0 %v1347
    %v1655 = vpop.f32.mrf.mxu0
    %v1656 = vadd.f32 %v1390, %v1655
    %v1657 = vpop.f32.mrf.mxu0
    %v1658 = vadd.f32 %v1394, %v1657
    %1659 = vmatprep.mubr.f32.mxu0 0.0
    %1660 = vmatmul.mubr.f32.gmra.mxu0 %v1348
    %v1661 = vpop.f32.mrf.mxu0
    %v1662 = vadd.f32 %v1390, %v1661
    %v1663 = vpop.f32.mrf.mxu0
    %v1664 = vadd.f32 %v1394, %v1663
    %1665 = vmatprep.mubr.f32.mxu0 0.0
    %1666 = vmatmul.mubr.f32.gmra.mxu0 %v1349
    %v1667 = vpop.f32.mrf.mxu0
    %v1668 = vadd.f32 %v1390, %v1667
    %v1669 = vpop.f32.mrf.mxu0
    %v1670 = vadd.f32 %v1394, %v1669
    %1671 = vmatprep.mubr.f32.mxu0 0.0
    %1672 = vmatmul.mubr.f32.gmra.mxu0 %v1350
    %v1673 = vpop.f32.mrf.mxu0
    %v1674 = vadd.f32 %v1390, %v1673
    %v1675 = vpop.f32.mrf.mxu0
    %v1676 = vadd.f32 %v1394, %v1675
    %1677 = vmatprep.mubr.f32.mxu0 0.0
    %1678 = vmatmul.mubr.f32.gmra.mxu0 %v1351
    %v1679 = vpop.f32.mrf.mxu0
    %v1680 = vadd.f32 %v1390, %v1679
    %v1681 = vpop.f32.mrf.mxu0
    %v1682 = vadd.f32 %v1394, %v1681
    %1683 = vmatprep.mubr.f32.mxu0 0.0
    %1684 = vmatmul.mubr.f32.gmra.mxu0 %v1352
    %v1685 = vpop.f32.mrf.mxu0
    %v1686 = vadd.f32 %v1390, %v1685
    %v1687 = vpop.f32.mrf.mxu0
    %v1688 = vadd.f32 %v1394, %v1687
    %1689 = vdwg.mxu0
    %1690 = vst [vmem:[#allocation5] sm:$0xff] %v1464
    %1691 = vst [vmem:[#allocation5 + $0x8] sm:$0xff] %v1466
    %1692 = vst [vmem:[#allocation5 + $0x10] sm:$0xff] %v1470
    %1693 = vst [vmem:[#allocation5 + $0x18] sm:$0xff] %v1472
    %1694 = vst [vmem:[#allocation5 + $0x20] sm:$0xff] %v1476
    %1695 = vst [vmem:[#allocation5 + $0x28] sm:$0xff] %v1478
    %1696 = vst [vmem:[#allocation5 + $0x30] sm:$0xff] %v1482
    %1697 = vst [vmem:[#allocation5 + $0x38] sm:$0xff] %v1484
    %1698 = vst [vmem:[#allocation5 + $0x40] sm:$0xff] %v1488
    %1699 = vst [vmem:[#allocation5 + $0x48] sm:$0xff] %v1490
    %1700 = vst [vmem:[#allocation5 + $0x50] sm:$0xff] %v1494
    %1701 = vst [vmem:[#allocation5 + $0x58] sm:$0xff] %v1496
    %1702 = vst [vmem:[#allocation5 + $0x60] sm:$0xff] %v1500
    %1703 = vst [vmem:[#allocation5 + $0x68] sm:$0xff] %v1502
    %1704 = vst [vmem:[#allocation5 + $0x70] sm:$0xff] %v1506
    %1705 = vst [vmem:[#allocation5 + $0x78] sm:$0xff] %v1508
    %1706 = vst [vmem:[#allocation5 + $0x80] sm:$0xff] %v1512
    %1707 = vst [vmem:[#allocation5 + $0x88] sm:$0xff] %v1514
    %1708 = vst [vmem:[#allocation5 + $0x90] sm:$0xff] %v1518
    %1709 = vst [vmem:[#allocation5 + $0x98] sm:$0xff] %v1520
    %1710 = vst [vmem:[#allocation5 + $0xa0] sm:$0xff] %v1524
    %1711 = vst [vmem:[#allocation5 + $0xa8] sm:$0xff] %v1526
    %1712 = vst [vmem:[#allocation5 + $0xb0] sm:$0xff] %v1530
    %1713 = vst [vmem:[#allocation5 + $0xb8] sm:$0xff] %v1532
    %1714 = vst [vmem:[#allocation5 + $0xc0] sm:$0xff] %v1536
    %1715 = vst [vmem:[#allocation5 + $0xc8] sm:$0xff] %v1538
    %1716 = vst [vmem:[#allocation5 + $0xd0] sm:$0xff] %v1542
    %1717 = vst [vmem:[#allocation5 + $0xd8] sm:$0xff] %v1544
    %1718 = vst [vmem:[#allocation5 + $0xe0] sm:$0xff] %v1548
    %1719 = vst [vmem:[#allocation5 + $0xe8] sm:$0xff] %v1550
    %1720 = vst [vmem:[#allocation5 + $0xf0] sm:$0xff] %v1554
    %1721 = vst [vmem:[#allocation5 + $0xf8] sm:$0xff] %v1556
    %1722 = vst [vmem:[#allocation5 + $0x100] sm:$0xff] %v1560
    %1723 = vst [vmem:[#allocation5 + $0x108] sm:$0xff] %v1562
    %1724 = vst [vmem:[#allocation5 + $0x110] sm:$0xff] %v1566
    %1725 = vst [vmem:[#allocation5 + $0x118] sm:$0xff] %v1568
    %1726 = vst [vmem:[#allocation5 + $0x120] sm:$0xff] %v1572
    %1727 = vst [vmem:[#allocation5 + $0x128] sm:$0xff] %v1574
    %1728 = vst [vmem:[#allocation5 + $0x130] sm:$0xff] %v1578
    %1729 = vst [vmem:[#allocation5 + $0x138] sm:$0xff] %v1580
    %1730 = vst [vmem:[#allocation5 + $0x140] sm:$0xff] %v1584
    %1731 = vst [vmem:[#allocation5 + $0x148] sm:$0xff] %v1586
    %1732 = vst [vmem:[#allocation5 + $0x150] sm:$0xff] %v1590
    %1733 = vst [vmem:[#allocation5 + $0x158] sm:$0xff] %v1592
    %1734 = vst [vmem:[#allocation5 + $0x160] sm:$0xff] %v1596
    %1735 = vst [vmem:[#allocation5 + $0x168] sm:$0xff] %v1598
    %1736 = vst [vmem:[#allocation5 + $0x170] sm:$0xff] %v1602
    %1737 = vst [vmem:[#allocation5 + $0x178] sm:$0xff] %v1604
    %1738 = vst [vmem:[#allocation5 + $0x180] sm:$0xff] %v1608
    %1739 = vst [vmem:[#allocation5 + $0x188] sm:$0xff] %v1610
    %1740 = vst [vmem:[#allocation5 + $0x190] sm:$0xff] %v1614
    %1741 = vst [vmem:[#allocation5 + $0x198] sm:$0xff] %v1616
    %1742 = vst [vmem:[#allocation5 + $0x1a0] sm:$0xff] %v1620
    %1743 = vst [vmem:[#allocation5 + $0x1a8] sm:$0xff] %v1622
    %1744 = vst [vmem:[#allocation5 + $0x1b0] sm:$0xff] %v1626
    %1745 = vst [vmem:[#allocation5 + $0x1b8] sm:$0xff] %v1628
    %1746 = vst [vmem:[#allocation5 + $0x1c0] sm:$0xff] %v1632
    %1747 = vst [vmem:[#allocation5 + $0x1c8] sm:$0xff] %v1634
    %1748 = vst [vmem:[#allocation5 + $0x1d0] sm:$0xff] %v1638
    %1749 = vst [vmem:[#allocation5 + $0x1d8] sm:$0xff] %v1640
    %1750 = vst [vmem:[#allocation5 + $0x1e0] sm:$0xff] %v1644
    %1751 = vst [vmem:[#allocation5 + $0x1e8] sm:$0xff] %v1646
    %1752 = vst [vmem:[#allocation5 + $0x1f0] sm:$0xff] %v1650
    %1753 = vst [vmem:[#allocation5 + $0x1f8] sm:$0xff] %v1652
    %1754 = vst [vmem:[#allocation5 + $0x200] sm:$0xff] %v1656
    %1755 = vst [vmem:[#allocation5 + $0x208] sm:$0xff] %v1658
    %1756 = vst [vmem:[#allocation5 + $0x210] sm:$0xff] %v1662
    %1757 = vst [vmem:[#allocation5 + $0x218] sm:$0xff] %v1664
    %1758 = vst [vmem:[#allocation5 + $0x220] sm:$0xff] %v1668
    %1759 = vst [vmem:[#allocation5 + $0x228] sm:$0xff] %v1670
    %1760 = vst [vmem:[#allocation5 + $0x230] sm:$0xff] %v1674
    %1761 = vst [vmem:[#allocation5 + $0x238] sm:$0xff] %v1676
    %1762 = vst [vmem:[#allocation5 + $0x240] sm:$0xff] %v1680
    %1763 = vst [vmem:[#allocation5 + $0x248] sm:$0xff] %v1682
    %1764 = vst [vmem:[#allocation5 + $0x250] sm:$0xff] %v1686
    %1765 = vst [vmem:[#allocation5 + $0x258] sm:$0xff] %v1688
    %1766 = vst.msk [vmem:[%s10] sm:$0xff] %vm522, %v473
    %1767 = vst.msk [vmem:[%s10 + $0x8] sm:$0xff] %vm522, %v474
    %1768 = vst.msk [vmem:[%s10 + $0x10] sm:$0xff] %vm522, %v475
    %1769 = vst.msk [vmem:[%s10 + $0x18] sm:$0xff] %vm522, %v476
    %1770 = vst.msk [vmem:[%s10 + $0x20] sm:$0xff] %vm522, %v477
    %1771 = vst.msk [vmem:[%s10 + $0x28] sm:$0xff] %vm522, %v478
    %1772 = vst.msk [vmem:[%s10 + $0x30] sm:$0xff] %vm522, %v479
    %1773 = vst.msk [vmem:[%s10 + $0x38] sm:$0xff] %vm522, %v480
    %1774 = vst.msk [vmem:[%s10 + $0x40] sm:$0xff] %vm522, %v481
    %1775 = vst.msk [vmem:[%s10 + $0x48] sm:$0xff] %vm522, %v482
    %1776 = vst.msk [vmem:[%s10 + $0x50] sm:$0xff] %vm522, %v483
    %1777 = vst.msk [vmem:[%s10 + $0x58] sm:$0xff] %vm522, %v484
    %1778 = vst.msk [vmem:[%s10 + $0x60] sm:$0xff] %vm522, %v485
    %1779 = vst.msk [vmem:[%s10 + $0x68] sm:$0xff] %vm522, %v486
    %1780 = vst.msk [vmem:[%s10 + $0x70] sm:$0xff] %vm522, %v487
    %1781 = vst.msk [vmem:[%s10 + $0x78] sm:$0xff] %vm522, %v488
    %1782 = vst.msk [vmem:[%s10 + $0x80] sm:$0xff] %vm522, %v489
    %1783 = vst.msk [vmem:[%s10 + $0x88] sm:$0xff] %vm522, %v490
    %1784 = vst.msk [vmem:[%s10 + $0x90] sm:$0xff] %vm522, %v491
    %1785 = vst.msk [vmem:[%s10 + $0x98] sm:$0xff] %vm522, %v492
    %1786 = vst.msk [vmem:[%s10 + $0xa0] sm:$0xff] %vm522, %v493
    %1787 = vst.msk [vmem:[%s10 + $0xa8] sm:$0xff] %vm522, %v494
    %1788 = vst.msk [vmem:[%s10 + $0xb0] sm:$0xff] %vm522, %v495
    %1789 = vst.msk [vmem:[%s10 + $0xb8] sm:$0xff] %vm522, %v496
    %1790 = vst.msk [vmem:[%s10 + $0xc0] sm:$0xff] %vm522, %v497
    %1791 = vst.msk [vmem:[%s10 + $0xc8] sm:$0xff] %vm522, %v498
    %1792 = vst.msk [vmem:[%s10 + $0xd0] sm:$0xff] %vm522, %v499
    %1793 = vst.msk [vmem:[%s10 + $0xd8] sm:$0xff] %vm522, %v500
    %1794 = vst.msk [vmem:[%s10 + $0xe0] sm:$0xff] %vm522, %v501
    %1795 = vst.msk [vmem:[%s10 + $0xe8] sm:$0xff] %vm522, %v502
    %1796 = vst.msk [vmem:[%s10 + $0xf0] sm:$0xff] %vm522, %v503
    %1797 = vst.msk [vmem:[%s10 + $0xf8] sm:$0xff] %vm522, %v504
    %1798 = vst.msk [vmem:[%s10 + $0x100] sm:$0xff] %vm522, %v505
    %1799 = vst.msk [vmem:[%s10 + $0x108] sm:$0xff] %vm522, %v506
    %1800 = vst.msk [vmem:[%s10 + $0x110] sm:$0xff] %vm522, %v507
    %1801 = vst.msk [vmem:[%s10 + $0x118] sm:$0xff] %vm522, %v508
    %1802 = vst.msk [vmem:[%s10 + $0x120] sm:$0xff] %vm522, %v509
    %1803 = vst.msk [vmem:[%s10 + $0x128] sm:$0xff] %vm522, %v510
    %1804 = vst.msk [vmem:[%s11] sm:$0xff] %vm945, %v892
    %1805 = vst.msk [vmem:[%s11 + $0x8] sm:$0xff] %vm945, %v893
    %1806 = vst.msk [vmem:[%s11 + $0x10] sm:$0xff] %vm945, %v894
    %1807 = vst.msk [vmem:[%s11 + $0x18] sm:$0xff] %vm945, %v895
    %1808 = vst.msk [vmem:[%s11 + $0x20] sm:$0xff] %vm945, %v896
    %1809 = vst.msk [vmem:[%s11 + $0x28] sm:$0xff] %vm945, %v897
    %1810 = vst.msk [vmem:[%s11 + $0x30] sm:$0xff] %vm945, %v898
    %1811 = vst.msk [vmem:[%s11 + $0x38] sm:$0xff] %vm945, %v899
    %1812 = vst.msk [vmem:[%s11 + $0x40] sm:$0xff] %vm945, %v900
    %1813 = vst.msk [vmem:[%s11 + $0x48] sm:$0xff] %vm945, %v901
    %1814 = vst.msk [vmem:[%s11 + $0x50] sm:$0xff] %vm945, %v902
    %1815 = vst.msk [vmem:[%s11 + $0x58] sm:$0xff] %vm945, %v903
    %1816 = vst.msk [vmem:[%s11 + $0x60] sm:$0xff] %vm945, %v904
    %1817 = vst.msk [vmem:[%s11 + $0x68] sm:$0xff] %vm945, %v905
    %1818 = vst.msk [vmem:[%s11 + $0x70] sm:$0xff] %vm945, %v906
    %1819 = vst.msk [vmem:[%s11 + $0x78] sm:$0xff] %vm945, %v907
    %1820 = vst.msk [vmem:[%s11 + $0x80] sm:$0xff] %vm945, %v908
    %1821 = vst.msk [vmem:[%s11 + $0x88] sm:$0xff] %vm945, %v909
    %1822 = vst.msk [vmem:[%s11 + $0x90] sm:$0xff] %vm945, %v910
    %1823 = vst.msk [vmem:[%s11 + $0x98] sm:$0xff] %vm945, %v911
    %1824 = vst.msk [vmem:[%s11 + $0xa0] sm:$0xff] %vm945, %v912
    %1825 = vst.msk [vmem:[%s11 + $0xa8] sm:$0xff] %vm945, %v913
    %1826 = vst.msk [vmem:[%s11 + $0xb0] sm:$0xff] %vm945, %v914
    %1827 = vst.msk [vmem:[%s11 + $0xb8] sm:$0xff] %vm945, %v915
    %1828 = vst.msk [vmem:[%s11 + $0xc0] sm:$0xff] %vm945, %v916
    %1829 = vst.msk [vmem:[%s11 + $0xc8] sm:$0xff] %vm945, %v917
    %1830 = vst.msk [vmem:[%s11 + $0xd0] sm:$0xff] %vm945, %v918
    %1831 = vst.msk [vmem:[%s11 + $0xd8] sm:$0xff] %vm945, %v919
    %1832 = vst.msk [vmem:[%s11 + $0xe0] sm:$0xff] %vm945, %v920
    %1833 = vst.msk [vmem:[%s11 + $0xe8] sm:$0xff] %vm945, %v921
    %1834 = vst.msk [vmem:[%s11 + $0xf0] sm:$0xff] %vm945, %v922
    %1835 = vst.msk [vmem:[%s11 + $0xf8] sm:$0xff] %vm945, %v923
    %1836 = vst.msk [vmem:[%s11 + $0x100] sm:$0xff] %vm945, %v924
    %1837 = vst.msk [vmem:[%s11 + $0x108] sm:$0xff] %vm945, %v925
    %1838 = vst.msk [vmem:[%s11 + $0x110] sm:$0xff] %vm945, %v926
    %1839 = vst.msk [vmem:[%s11 + $0x118] sm:$0xff] %vm945, %v927
    %1840 = vst.msk [vmem:[%s11 + $0x120] sm:$0xff] %vm945, %v928
    %1841 = vst.msk [vmem:[%s11 + $0x128] sm:$0xff] %vm945, %v929
    %1842 = vst [vmem:[#allocation6] sm:$0xff] %v1315
    %1843 = vst [vmem:[#allocation6 + $0x8] sm:$0xff] %v1316
    %1844 = vst [vmem:[#allocation6 + $0x10] sm:$0xff] %v1317
    %1845 = vst [vmem:[#allocation6 + $0x18] sm:$0xff] %v1318
    %1846 = vst [vmem:[#allocation6 + $0x20] sm:$0xff] %v1319
    %1847 = vst [vmem:[#allocation6 + $0x28] sm:$0xff] %v1320
    %1848 = vst [vmem:[#allocation6 + $0x30] sm:$0xff] %v1321
    %1849 = vst [vmem:[#allocation6 + $0x38] sm:$0xff] %v1322
    %1850 = vst [vmem:[#allocation6 + $0x40] sm:$0xff] %v1323
    %1851 = vst [vmem:[#allocation6 + $0x48] sm:$0xff] %v1324
    %1852 = vst [vmem:[#allocation6 + $0x50] sm:$0xff] %v1325
    %1853 = vst [vmem:[#allocation6 + $0x58] sm:$0xff] %v1326
    %1854 = vst [vmem:[#allocation6 + $0x60] sm:$0xff] %v1327
    %1855 = vst [vmem:[#allocation6 + $0x68] sm:$0xff] %v1328
    %1856 = vst [vmem:[#allocation6 + $0x70] sm:$0xff] %v1329
    %1857 = vst [vmem:[#allocation6 + $0x78] sm:$0xff] %v1330
    %1858 = vst [vmem:[#allocation6 + $0x80] sm:$0xff] %v1331
    %1859 = vst [vmem:[#allocation6 + $0x88] sm:$0xff] %v1332
    %1860 = vst [vmem:[#allocation6 + $0x90] sm:$0xff] %v1333
    %1861 = vst [vmem:[#allocation6 + $0x98] sm:$0xff] %v1334
    %1862 = vst [vmem:[#allocation6 + $0xa0] sm:$0xff] %v1335
    %1863 = vst [vmem:[#allocation6 + $0xa8] sm:$0xff] %v1336
    %1864 = vst [vmem:[#allocation6 + $0xb0] sm:$0xff] %v1337
    %1865 = vst [vmem:[#allocation6 + $0xb8] sm:$0xff] %v1338
    %1866 = vst [vmem:[#allocation6 + $0xc0] sm:$0xff] %v1339
    %1867 = vst [vmem:[#allocation6 + $0xc8] sm:$0xff] %v1340
    %1868 = vst [vmem:[#allocation6 + $0xd0] sm:$0xff] %v1341
    %1869 = vst [vmem:[#allocation6 + $0xd8] sm:$0xff] %v1342
    %1870 = vst [vmem:[#allocation6 + $0xe0] sm:$0xff] %v1343
    %1871 = vst [vmem:[#allocation6 + $0xe8] sm:$0xff] %v1344
    %1872 = vst [vmem:[#allocation6 + $0xf0] sm:$0xff] %v1345
    %1873 = vst [vmem:[#allocation6 + $0xf8] sm:$0xff] %v1346
    %1874 = vst [vmem:[#allocation6 + $0x100] sm:$0xff] %v1347
    %1875 = vst [vmem:[#allocation6 + $0x108] sm:$0xff] %v1348
    %1876 = vst [vmem:[#allocation6 + $0x110] sm:$0xff] %v1349
    %1877 = vst [vmem:[#allocation6 + $0x118] sm:$0xff] %v1350
    %1878 = vst [vmem:[#allocation6 + $0x120] sm:$0xff] %v1351
    %1879 = vst [vmem:[#allocation6 + $0x128] sm:$0xff] %v1352
    // Predicated region
    $region42: #{tpu_custom_call.1} parent=1 // pred_check
      _
    $region43: #{tpu_custom_call.1} parent=1 // pred_check_branch
      %1881 = sbr.rel (0) target = $region45
    $region44: #{tpu_custom_call.1} parent=1 // pred_region
      %s1883 = ssub.s32 9728, 9728
      %1884 = vsyncadd [#allocation4], %s1883
      %s1885 = sshll.u32 [#allocation5], 4
      %s1886 = int_to_ptr.vmem [resolvable:$true] %s1885
      %1891 = dma.vmem_to_hbm [thread:$0]  %s1886, 9728, %s9, [#allocation4], 256, 256, 16
    $region45: #{tpu_custom_call.1} parent=1 // pred_fallthru
      _
    // Predicated region
    $region46: #{tpu_custom_call.1} parent=1 // pred_check
      _
    $region47: #{tpu_custom_call.1} parent=1 // pred_check_branch
      %1893 = sbr.rel (0) target = $region49
    $region48: #{tpu_custom_call.1} parent=1 // pred_region
      _
    $region49: #{tpu_custom_call.1} parent=1 // pred_fallthru
      _
    // Predicated region
    $region50: #{tpu_custom_call.1} parent=1 // pred_check
      _
    $region51: #{tpu_custom_call.1} parent=1 // pred_check_branch
      %1895 = sbr.rel (0) target = $region53
    $region52: #{tpu_custom_call.1} parent=1 // pred_region
      _
    $region53: #{tpu_custom_call.1} parent=1 // pred_fallthru
      _
    // Predicated region
    $region54: #{tpu_custom_call.1} parent=1 // pred_check
      _
    $region55: #{tpu_custom_call.1} parent=1 // pred_check_branch
      %1897 = sbr.rel (0) target = $region57
    $region56: #{tpu_custom_call.1} parent=1 // pred_region
      %s1899 = ssub.s32 4864, 4864
      %1900 = vsyncadd [#allocation7], %s1899
      %s1901 = sshll.u32 [#allocation6], 4
      %s1902 = int_to_ptr.vmem [resolvable:$true] %s1901
      %1907 = dma.vmem_to_hbm [thread:$0]  %s1902, 4864, %s12, [#allocation7], 128, 128, 8
    $region57: #{tpu_custom_call.1} parent=1 // pred_fallthru
      _
    // Predicated region
    $region58: #{tpu_custom_call.1} parent=1 // pred_check
      _
    $region59: #{tpu_custom_call.1} parent=1 // pred_check_branch
      %1909 = sbr.rel (0) target = $region61
    $region60: #{tpu_custom_call.1} parent=1 // pred_region
      %1910 = dma.done [#allocation4], 9728
    $region61: #{tpu_custom_call.1} parent=1 // pred_fallthru
      _
    // Predicated region
    $region62: #{tpu_custom_call.1} parent=1 // pred_check
      _
    $region63: #{tpu_custom_call.1} parent=1 // pred_check_branch
      %1912 = sbr.rel (0) target = $region65
    $region64: #{tpu_custom_call.1} parent=1 // pred_region
      _
    $region65: #{tpu_custom_call.1} parent=1 // pred_fallthru
      _
    // Predicated region
    $region66: #{tpu_custom_call.1} parent=1 // pred_check
      _
    $region67: #{tpu_custom_call.1} parent=1 // pred_check_branch
      %1914 = sbr.rel (0) target = $region69
    $region68: #{tpu_custom_call.1} parent=1 // pred_region
      _
    $region69: #{tpu_custom_call.1} parent=1 // pred_fallthru
      _
    // Predicated region
    $region70: #{tpu_custom_call.1} parent=1 // pred_check
      _
    $region71: #{tpu_custom_call.1} parent=1 // pred_check_branch
      %1916 = sbr.rel (0) target = $region73
    $region72: #{tpu_custom_call.1} parent=1 // pred_region
      %1917 = dma.done [#allocation7], 4864
    $region73: #{tpu_custom_call.1} parent=1 // pred_fallthru
      _
    %1918 = vsyncpa [#allocation3], 1
    %1919 = vsyncpa [#allocation4], 1
    %1920 = vsyncpa [#allocation7], 1

</llo_original>
